<compile_context>
chip_gen: v7x
topology: tpu7x:2x2x1
jax: 0.10.0
libtpu: 0.0.40
codegen_flags: <defaults>
</compile_context>

<pallas_src>
import functools

import jax
import jax.numpy as jnp
from jax import lax
from jax.experimental import pallas as pl
from jax.experimental.pallas import tpu as pltpu


def _round_up(x: int, m: int) -> int:
    return ((x + m - 1) // m) * m


# --------------------------------------------------------------------------
# Kernels
# --------------------------------------------------------------------------
def _decoder_kernel_resident(x_ref, w1_ref, b1_ref, wm_ref, bm_ref, w2_ref,
                             b2_ref, o_ref, h_ref, *, num_mid: int):
    """All weights resident in VMEM; unrolled loop over middle layers.

    x_ref : (tm, Ep)                      input batch tile
    w1_ref: (Ep, Hp)    b1_ref: (1, Hp)   first layer (pre-transposed)
    wm_ref: (L, Hp, Hp) bm_ref: (L, 1, Hp)stacked middle layers
    w2_ref: (Hp, Np)    b2_ref: (1, Np)   last layer (lane-dense padded N)
    o_ref : (tm, Np)                      padded output tile
    h_ref : (tm, Hp) VMEM scratch         activation stays on-chip
    """
    h = jnp.dot(x_ref[...], w1_ref[...], preferred_element_type=jnp.float32)
    h_ref[...] = jnp.maximum(h + b1_ref[...], 0.0).astype(h_ref.dtype)

    def body(l, carry):
        hh = jnp.dot(h_ref[...], wm_ref[l],
                     preferred_element_type=jnp.float32) + bm_ref[l]
        h_ref[...] = jnp.maximum(hh, 0.0).astype(h_ref.dtype)
        return carry

    lax.fori_loop(0, num_mid, body, 0, unroll=True)

    y = jnp.dot(h_ref[...], w2_ref[...], preferred_element_type=jnp.float32)
    o_ref[...] = (y + b2_ref[...]).astype(o_ref.dtype)


def _decoder_kernel_shallow(x_ref, w1_ref, b1_ref, w2_ref, b2_ref,
                            o_ref, h_ref):
    """num_layers == 2: no middle layers, no dummy wm/bm operands."""
    h = jnp.dot(x_ref[...], w1_ref[...], preferred_element_type=jnp.float32)
    h_ref[...] = jnp.maximum(h + b1_ref[...], 0.0).astype(h_ref.dtype)
    y = jnp.dot(h_ref[...], w2_ref[...], preferred_element_type=jnp.float32)
    o_ref[...] = (y + b2_ref[...]).astype(o_ref.dtype)


def _decoder_kernel_stream(x_ref, w1_ref, b1_ref, wm_ref, bm_ref, w2_ref,
                           b2_ref, o_ref, h_ref, *, num_mid: int):
    """Middle layers streamed over grid axis 1 (one (1, Hp, Hp) slice/step).

    The activation h_ref is a persistent VMEM scratch carried across the
    layer axis; the output tile is only written on the last layer step.
    """
    l = pl.program_id(1)

    @pl.when(l == 0)
    def _():
        h = jnp.dot(x_ref[...], w1_ref[...],
                    preferred_element_type=jnp.float32)
        h_ref[...] = jnp.maximum(h + b1_ref[...], 0.0).astype(h_ref.dtype)

    hh = jnp.dot(h_ref[...], wm_ref[0],
                 preferred_element_type=jnp.float32) + bm_ref[0]
    h_ref[...] = jnp.maximum(hh, 0.0).astype(h_ref.dtype)

    @pl.when(l == num_mid - 1)
    def _():
        y = jnp.dot(h_ref[...], w2_ref[...],
                    preferred_element_type=jnp.float32)
        o_ref[...] = (y + b2_ref[...]).astype(o_ref.dtype)


# --------------------------------------------------------------------------
# Parameters
# --------------------------------------------------------------------------
def init_decoder_params(key, embedding_dim, num_layers, hidden_dim,
                        output_dim=2, dtype=jnp.float32):
    """Deterministic init mirroring the nn.Linear shapes in __init__.
    Weights kept in PyTorch layout (out_features, in_features)."""
    dims = [(embedding_dim, hidden_dim)]
    dims += [(hidden_dim, hidden_dim)] * (num_layers - 2)
    dims += [(hidden_dim, output_dim)]
    params = []
    for (fan_in, fan_out) in dims:
        key, kw, kb = jax.random.split(key, 3)
        bound = 1.0 / jnp.sqrt(fan_in)
        w = jax.random.uniform(kw, (fan_out, fan_in), dtype, -bound, bound)
        b = jax.random.uniform(kb, (fan_out,), dtype, -bound, bound)
        params.append((w, b))
    return params


def prepare_decoder_params(params, compute_dtype=jnp.bfloat16):
    """One-time preprocessing (outside the kernel):
       * transpose PyTorch (out,in) weights to (in,out)  -> no in-kernel w.T
       * zero-pad feature dims to multiples of 128       -> lane-dense MXU tiles
       * cast weights to compute_dtype (bf16 by default); biases stay f32
       * stack middle layers; biases reshaped to (1, N)
    Zero-padding is exact: padded hidden units get 0 pre-activation
    (ReLU(0)=0) and feed zero weights; padded output columns are sliced off."""
    assert len(params) >= 2
    (w1, b1) = params[0]
    (w2, b2) = params[-1]
    mids = params[1:-1]

    H, E = w1.shape
    O = w2.shape[0]
    Ep, Hp, Np = _round_up(E, 128), _round_up(H, 128), _round_up(O, 128)

    def pad2(a, r, c):
        return jnp.pad(a, ((0, r - a.shape[0]), (0, c - a.shape[1])))

    w1_t = pad2(w1.T, Ep, Hp).astype(compute_dtype)                  # (Ep, Hp)
    b1_p = jnp.pad(b1, (0, Hp - H)).reshape(1, Hp).astype(jnp.float32)

    L = len(mids)
    if L > 0:
        wm = jnp.stack([pad2(w.T, Hp, Hp) for (w, _) in mids]
                       ).astype(compute_dtype)                       # (L,Hp,Hp)
        bm = jnp.stack([jnp.pad(b, (0, Hp - H)).reshape(1, Hp)
                        for (_, b) in mids]).astype(jnp.float32)     # (L,1,Hp)
    else:
        wm, bm = None, None

    w2_t = pad2(w2.T, Hp, Np).astype(compute_dtype)                  # (Hp, Np)
    b2_p = jnp.pad(b2, (0, Np - O)).reshape(1, Np).astype(jnp.float32)

    return dict(w1=w1_t, b1=b1_p, wm=wm, bm=bm, w2=w2_t, b2=b2_p,
                dims=(E, H, O, Ep, Hp, Np, L))


# --------------------------------------------------------------------------
# VMEM budget (per generation, per TensorCore)
# --------------------------------------------------------------------------
def _vmem_budget_bytes() -> int:
    cap = None
    try:
        info = pltpu.get_tpu_info()
        cap = getattr(info, "vmem_capacity_bytes", None)
    except Exception:
        cap = None
    if not cap:
        kind = ""
        try:
            kind = jax.devices()[0].device_kind.lower()
        except Exception:
            pass
        if ("v4" in kind) or ("v5" in kind) or ("v6" in kind):
            cap = 128 * 1024 * 1024          # v4/v5e/v6e: 128 MiB physical
        else:
            cap = 64 * 1024 * 1024           # v7x (64 MiB / TC) or unknown
    # leave headroom for compiler-internal scratch / semaphores
    return (int(cap) * 3) // 4


# --------------------------------------------------------------------------
# Forward
# --------------------------------------------------------------------------
def decoder_deep_forward(embedding, prep, *, force_streaming=False):
    """Forward pass identical to Decoder_deep.forward, as one fused Pallas
    kernel gridded over batch tiles (and over layers when streaming)."""
    E, H, O, Ep, Hp, Np, L = prep["dims"]
    M = embedding.shape[0]
    assert embedding.shape[1] == E, (embedding.shape, E)

    compute_dtype = prep["w1"].dtype
    out_dtype = embedding.dtype
    budget = _vmem_budget_bytes()

    wsz = jnp.dtype(compute_dtype).itemsize     # weight / activation bytes
    bsz = 4                                     # biases stay f32
    xsz = wsz                                   # x is cast to compute_dtype
    osz = jnp.dtype(out_dtype).itemsize

    small_w = (Ep * Hp + Hp * Np) * wsz + (Hp + Np) * bsz
    mid_resident = L * (Hp * Hp * wsz + Hp * bsz)        # single-buffered
    mid_stream = 2 * (Hp * Hp * wsz + Hp * bsz)          # double-buffered

    def tile_bytes(tm):
        # double-buffered x & out tiles + persistent activation scratch
        return 2 * tm * Ep * xsz + 2 * tm * Np * osz + tm * Hp * wsz

    # --- batch tile: big tiles amortize per-step overhead / feed the MXU ---
    if M >= 512:
        tm = 512
    elif M >= 256:
        tm = 256
    else:
        tm = _round_up(max(M, 1), 8)

    # --- resident vs. streaming decision (fallback instead of clamping) ---
    use_streaming = (force_streaming and L > 0) or (
        L > 0 and small_w + mid_resident + tile_bytes(tm) > budget)
    resident_w = small_w + (mid_stream if use_streaming else mid_resident)

    # shrink tm (multiples of 8) if per-tile cost alone overflows the budget
    while tm > 8 and resident_w + tile_bytes(tm) > budget:
        tm = max(8, _round_up(tm // 2, 8))

    Mp = _round_up(M, tm)

    x = embedding
    if (Mp, Ep) != (M, E):
        x = jnp.pad(x, ((0, Mp - M), (0, Ep - E)))
    if x.dtype != compute_dtype:
        x = x.astype(compute_dtype)

    def run(single_buffer_weights):
        def wspec(shape, index_map):
            # Weights / biases have constant index maps -> single-buffer them.
            if single_buffer_weights:
                return pl.BlockSpec(shape, index_map,
                                    pipeline_mode=pl.Buffered(1))
            return pl.BlockSpec(shape, index_map)

        if use_streaming:
            kernel = functools.partial(_decoder_kernel_stream, num_mid=L)
            grid = (Mp // tm, L)
            in_specs = [
                pl.BlockSpec((tm, Ep), lambda i, l: (i, 0)),      # x
                wspec((Ep, Hp), lambda i, l: (0, 0)),             # w1
                wspec((1, Hp), lambda i, l: (0, 0)),              # b1
                pl.BlockSpec((1, Hp, Hp), lambda i, l: (l, 0, 0)),  # wm (streamed)
                pl.BlockSpec((1, 1, Hp), lambda i, l: (l, 0, 0)),   # bm (streamed)
                wspec((Hp, Np), lambda i, l: (0, 0)),             # w2
                wspec((1, Np), lambda i, l: (0, 0)),              # b2
            ]
            out_spec = pl.BlockSpec((tm, Np), lambda i, l: (i, 0))
            args = (x, prep["w1"], prep["b1"], prep["wm"], prep["bm"],
                    prep["w2"], prep["b2"])
            semantics = ("parallel", "arbitrary")
        elif L > 0:
            kernel = functools.partial(_decoder_kernel_resident, num_mid=L)
            grid = (Mp // tm,)
            in_specs = [
                pl.BlockSpec((tm, Ep), lambda i: (i, 0)),         # x
                wspec((Ep, Hp), lambda i: (0, 0)),                # w1
                wspec((1, Hp), lambda i: (0, 0)),                 # b1
                wspec((L, Hp, Hp), lambda i: (0, 0, 0)),          # stacked mids
                wspec((L, 1, Hp), lambda i: (0, 0, 0)),           # stacked biases
                wspec((Hp, Np), lambda i: (0, 0)),                # w2
                wspec((1, Np), lambda i: (0, 0)),                 # b2
            ]
            out_spec = pl.BlockSpec((tm, Np), lambda i: (i, 0))
            args = (x, prep["w1"], prep["b1"], prep["wm"], prep["bm"],
                    prep["w2"], prep["b2"])
            semantics = ("parallel",)
        else:
            kernel = _decoder_kernel_shallow
            grid = (Mp // tm,)
            in_specs = [
                pl.BlockSpec((tm, Ep), lambda i: (i, 0)),         # x
                wspec((Ep, Hp), lambda i: (0, 0)),                # w1
                wspec((1, Hp), lambda i: (0, 0)),                 # b1
                wspec((Hp, Np), lambda i: (0, 0)),                # w2
                wspec((1, Np), lambda i: (0, 0)),                 # b2
            ]
            out_spec = pl.BlockSpec((tm, Np), lambda i: (i, 0))
            args = (x, prep["w1"], prep["b1"], prep["w2"], prep["b2"])
            semantics = ("parallel",)

        return pl.pallas_call(
            kernel,
            out_shape=jax.ShapeDtypeStruct((Mp, Np), out_dtype),
            grid=grid,
            in_specs=in_specs,
            out_specs=out_spec,
            scratch_shapes=[pltpu.VMEM((tm, Hp), compute_dtype)],
            compiler_params=pltpu.CompilerParams(
                dimension_semantics=semantics,
                vmem_limit_bytes=int(budget),
            ),
        )(*args)

    try:
        out_padded = run(True)
    except Exception:
        # Compatibility fallback for JAX versions without pipeline_mode /
        # single-buffered BlockSpecs.
        out_padded = run(False)

    # Slice off batch and lane padding (output_dim may be tiny, e.g. 2).
    return out_padded[:M, :O]


def decoder_deep_reference(embedding, params):
    h = embedding
    n = len(params)
    for i, (w, b) in enumerate(params):
        h = h @ w.T + b
        if i < n - 1:
            h = jnp.maximum(h, 0.0)
    return h


if __name__ == "__main__":
    batch = 16
    embedding_dim = 32
    hidden_dim = 32
    num_layers = 4        # layer1 + 2 hidden layers + layer2
    output_dim = 2

    key = jax.random.PRNGKey(0)
    key, kx, kp, kp2 = jax.random.split(key, 4)
    embedding = jax.random.normal(kx, (batch, embedding_dim), jnp.float32)

    params = init_decoder_params(kp, embedding_dim, num_layers, hidden_dim,
                                 output_dim)
    ref = decoder_deep_reference(embedding, params)

    # 1) Exact f32 path (resident weights) -- tight tolerance.
    prep32 = prepare_decoder_params(params, compute_dtype=jnp.float32)
    out32 = jax.block_until_ready(decoder_deep_forward(embedding, prep32))
    assert out32.shape == (batch, output_dim), out32.shape
    assert jnp.allclose(out32, ref, atol=1e-5, rtol=1e-5), "f32 mismatch"

    # 2) bf16 perf path (default), resident weights.
    prep16 = prepare_decoder_params(params)   # compute_dtype=bf16
    out16 = jax.block_until_ready(decoder_deep_forward(embedding, prep16))
    assert out16.shape == (batch, output_dim), out16.shape
    assert jnp.allclose(out16, ref, atol=5e-2, rtol=5e-2), "bf16 mismatch"

    # 3) bf16 layer-streaming path (what large hidden/depth configs use on v7x).
    out_s = jax.block_until_ready(
        decoder_deep_forward(embedding, prep16, force_streaming=True))
    assert jnp.allclose(out_s, ref, atol=5e-2, rtol=5e-2), "stream mismatch"

    # 4) num_layers == 2 (no middle layers -> 5-ref kernel), exact f32.
    params2 = init_decoder_params(kp2, embedding_dim, 2, hidden_dim, output_dim)
    prep2 = prepare_decoder_params(params2, compute_dtype=jnp.float32)
    out2 = jax.block_until_ready(decoder_deep_forward(embedding, prep2))
    ref2 = decoder_deep_reference(embedding, params2)
    assert jnp.allclose(out2, ref2, atol=1e-5, rtol=1e-5), "shallow mismatch"

    print("KERNEL_OK")
</pallas_src>

<mosaic_0001>
module attributes {stable_mosaic.version = 11 : i64} {
  func.func @_decoder_kernel_resident(%arg0: i32, %arg1: memref<16x128xf32, #tpu.memory_space<vmem>>, %arg2: memref<128x128xf32, #tpu.memory_space<vmem>>, %arg3: memref<1x128xf32, #tpu.memory_space<vmem>>, %arg4: memref<2x128x128xf32, #tpu.memory_space<vmem>>, %arg5: memref<2x1x128xf32, #tpu.memory_space<vmem>>, %arg6: memref<128x128xf32, #tpu.memory_space<vmem>>, %arg7: memref<1x128xf32, #tpu.memory_space<vmem>>, %arg8: memref<16x128xf32, #tpu.memory_space<vmem>>, %arg9: memref<16x128xf32, #tpu.memory_space<vmem>>) attributes {dimension_semantics = [#tpu.dimension_semantics<parallel>], iteration_bounds = array<i64: 1>, scalar_prefetch = 0 : i64, scratch_operands = 1 : i64, tpu.core_type = #tpu.core_type<tc>, window_params = [{transform_indices = @transform_0, window_bounds = array<i64: 16, 128>}, {pipeline_mode = #tpu.pipeline_mode<synchronous>, transform_indices = @transform_1, window_bounds = array<i64: 128, 128>}, {pipeline_mode = #tpu.pipeline_mode<synchronous>, transform_indices = @transform_2, window_bounds = array<i64: 1, 128>}, {pipeline_mode = #tpu.pipeline_mode<synchronous>, transform_indices = @transform_3, window_bounds = array<i64: 2, 128, 128>}, {pipeline_mode = #tpu.pipeline_mode<synchronous>, transform_indices = @transform_4, window_bounds = array<i64: 2, 1, 128>}, {pipeline_mode = #tpu.pipeline_mode<synchronous>, transform_indices = @transform_5, window_bounds = array<i64: 128, 128>}, {pipeline_mode = #tpu.pipeline_mode<synchronous>, transform_indices = @transform_6, window_bounds = array<i64: 1, 128>}, {transform_indices = @transform_7, window_bounds = array<i64: 16, 128>}]} {
    %c0 = arith.constant 0 : index
    %c0_0 = arith.constant 0 : index
    %0 = vector.load %arg1[%c0, %c0_0] : memref<16x128xf32, #tpu.memory_space<vmem>>, vector<16x128xf32>
    %c0_1 = arith.constant 0 : index
    %c0_2 = arith.constant 0 : index
    %1 = vector.load %arg2[%c0_1, %c0_2] : memref<128x128xf32, #tpu.memory_space<vmem>>, vector<128x128xf32>
    %cst = arith.constant dense<0.000000e+00> : vector<16x128xf32>
    %2 = tpu.matmul %0, %1, %cst {dimension_numbers = #tpu.dot_dimension_numbers<[1], [0], [0], [1], [0, 0, 1, 1], [], []>} : vector<16x128xf32>, vector<128x128xf32>, vector<16x128xf32> -> vector<16x128xf32>
    %c0_3 = arith.constant 0 : index
    %c0_4 = arith.constant 0 : index
    %3 = vector.load %arg3[%c0_3, %c0_4] : memref<1x128xf32, #tpu.memory_space<vmem>>, vector<1x128xf32>
    %4 = vector.broadcast %3 : vector<1x128xf32> to vector<16x128xf32>
    %5 = arith.addf %2, %4 : vector<16x128xf32>
    %cst_5 = arith.constant 0.000000e+00 : f32
    %6 = vector.broadcast %cst_5 : f32 to vector<16x128xf32>
    %7 = arith.maximumf %5, %6 : vector<16x128xf32>
    %c0_6 = arith.constant 0 : index
    %c0_7 = arith.constant 0 : index
    %8 = vector.load %arg9[%c0_6, %c0_7] : memref<16x128xf32, #tpu.memory_space<vmem>>, vector<16x128xf32>
    tpu.vector_store %arg9[%c0_6, %c0_7], %7 {strides = array<i32>} : memref<16x128xf32, #tpu.memory_space<vmem>>, vector<16x128xf32>,
    %c0_i32 = arith.constant 0 : i32
    %c0_8 = arith.constant 0 : index
    %c0_9 = arith.constant 0 : index
    %9 = vector.load %arg9[%c0_8, %c0_9] : memref<16x128xf32, #tpu.memory_space<vmem>>, vector<16x128xf32>
    %10 = arith.index_cast %c0_i32 : i32 to index
    %c0_10 = arith.constant 0 : index
    %c0_11 = arith.constant 0 : index
    %11 = vector.load %arg4[%10, %c0_10, %c0_11] : memref<2x128x128xf32, #tpu.memory_space<vmem>>, vector<1x128x128xf32>
    %12 = vector.shape_cast %11 : vector<1x128x128xf32> to vector<128x128xf32>
    %cst_12 = arith.constant dense<0.000000e+00> : vector<16x128xf32>
    %13 = tpu.matmul %9, %12, %cst_12 {dimension_numbers = #tpu.dot_dimension_numbers<[1], [0], [0], [1], [0, 0, 1, 1], [], []>} : vector<16x128xf32>, vector<128x128xf32>, vector<16x128xf32> -> vector<16x128xf32>
    %14 = arith.index_cast %c0_i32 : i32 to index
    %c0_13 = arith.constant 0 : index
    %c0_14 = arith.constant 0 : index
    %15 = vector.load %arg5[%14, %c0_13, %c0_14] : memref<2x1x128xf32, #tpu.memory_space<vmem>>, vector<1x1x128xf32>
    %16 = vector.shape_cast %15 : vector<1x1x128xf32> to vector<1x128xf32>
    %17 = vector.broadcast %16 : vector<1x128xf32> to vector<16x128xf32>
    %18 = arith.addf %13, %17 : vector<16x128xf32>
    %cst_15 = arith.constant 0.000000e+00 : f32
    %19 = vector.broadcast %cst_15 : f32 to vector<16x128xf32>
    %20 = arith.maximumf %18, %19 : vector<16x128xf32>
    %c0_16 = arith.constant 0 : index
    %c0_17 = arith.constant 0 : index
    %21 = vector.load %arg9[%c0_16, %c0_17] : memref<16x128xf32, #tpu.memory_space<vmem>>, vector<16x128xf32>
    tpu.vector_store %arg9[%c0_16, %c0_17], %20 {strides = array<i32>} : memref<16x128xf32, #tpu.memory_space<vmem>>, vector<16x128xf32>,
    %c1_i32 = arith.constant 1 : i32
    %c0_18 = arith.constant 0 : index
    %c0_19 = arith.constant 0 : index
    %22 = vector.load %arg9[%c0_18, %c0_19] : memref<16x128xf32, #tpu.memory_space<vmem>>, vector<16x128xf32>
    %23 = arith.index_cast %c1_i32 : i32 to index
    %c0_20 = arith.constant 0 : index
    %c0_21 = arith.constant 0 : index
    %24 = vector.load %arg4[%23, %c0_20, %c0_21] : memref<2x128x128xf32, #tpu.memory_space<vmem>>, vector<1x128x128xf32>
    %25 = vector.shape_cast %24 : vector<1x128x128xf32> to vector<128x128xf32>
    %cst_22 = arith.constant dense<0.000000e+00> : vector<16x128xf32>
    %26 = tpu.matmul %22, %25, %cst_22 {dimension_numbers = #tpu.dot_dimension_numbers<[1], [0], [0], [1], [0, 0, 1, 1], [], []>} : vector<16x128xf32>, vector<128x128xf32>, vector<16x128xf32> -> vector<16x128xf32>
    %27 = arith.index_cast %c1_i32 : i32 to index
    %c0_23 = arith.constant 0 : index
    %c0_24 = arith.constant 0 : index
    %28 = vector.load %arg5[%27, %c0_23, %c0_24] : memref<2x1x128xf32, #tpu.memory_space<vmem>>, vector<1x1x128xf32>
    %29 = vector.shape_cast %28 : vector<1x1x128xf32> to vector<1x128xf32>
    %30 = vector.broadcast %29 : vector<1x128xf32> to vector<16x128xf32>
    %31 = arith.addf %26, %30 : vector<16x128xf32>
    %cst_25 = arith.constant 0.000000e+00 : f32
    %32 = vector.broadcast %cst_25 : f32 to vector<16x128xf32>
    %33 = arith.maximumf %31, %32 : vector<16x128xf32>
    %c0_26 = arith.constant 0 : index
    %c0_27 = arith.constant 0 : index
    %34 = vector.load %arg9[%c0_26, %c0_27] : memref<16x128xf32, #tpu.memory_space<vmem>>, vector<16x128xf32>
    tpu.vector_store %arg9[%c0_26, %c0_27], %33 {strides = array<i32>} : memref<16x128xf32, #tpu.memory_space<vmem>>, vector<16x128xf32>,
    %c2_i32 = arith.constant 2 : i32
    %c0_28 = arith.constant 0 : index
    %c0_29 = arith.constant 0 : index
    %35 = vector.load %arg9[%c0_28, %c0_29] : memref<16x128xf32, #tpu.memory_space<vmem>>, vector<16x128xf32>
    %c0_30 = arith.constant 0 : index
    %c0_31 = arith.constant 0 : index
    %36 = vector.load %arg6[%c0_30, %c0_31] : memref<128x128xf32, #tpu.memory_space<vmem>>, vector<128x128xf32>
    %cst_32 = arith.constant dense<0.000000e+00> : vector<16x128xf32>
    %37 = tpu.matmul %35, %36, %cst_32 {dimension_numbers = #tpu.dot_dimension_numbers<[1], [0], [0], [1], [0, 0, 1, 1], [], []>} : vector<16x128xf32>, vector<128x128xf32>, vector<16x128xf32> -> vector<16x128xf32>
    %c0_33 = arith.constant 0 : index
    %c0_34 = arith.constant 0 : index
    %38 = vector.load %arg7[%c0_33, %c0_34] : memref<1x128xf32, #tpu.memory_space<vmem>>, vector<1x128xf32>
    %39 = vector.broadcast %38 : vector<1x128xf32> to vector<16x128xf32>
    %40 = arith.addf %37, %39 : vector<16x128xf32>
    %c0_35 = arith.constant 0 : index
    %c0_36 = arith.constant 0 : index
    %41 = vector.load %arg8[%c0_35, %c0_36] : memref<16x128xf32, #tpu.memory_space<vmem>>, vector<16x128xf32>
    tpu.vector_store %arg8[%c0_35, %c0_36], %40 {strides = array<i32>} : memref<16x128xf32, #tpu.memory_space<vmem>>, vector<16x128xf32>,
    return
  }
  func.func @transform_0(%arg0: i32) -> (i32, i32) {
    %c0_i32 = arith.constant 0 : i32
    %c0_i32_0 = arith.constant 0 : i32
    return %arg0, %c0_i32 : i32, i32
  }
  func.func @transform_1(%arg0: i32) -> (i32, i32) {
    %c0_i32 = arith.constant 0 : i32
    %c0_i32_0 = arith.constant 0 : i32
    %c0_i32_1 = arith.constant 0 : i32
    return %c0_i32, %c0_i32_0 : i32, i32
  }
  func.func @transform_2(%arg0: i32) -> (i32, i32) {
    %c0_i32 = arith.constant 0 : i32
    %c0_i32_0 = arith.constant 0 : i32
    %c0_i32_1 = arith.constant 0 : i32
    return %c0_i32, %c0_i32_0 : i32, i32
  }
  func.func @transform_3(%arg0: i32) -> (i32, i32, i32) {
    %c0_i32 = arith.constant 0 : i32
    %c0_i32_0 = arith.constant 0 : i32
    %c0_i32_1 = arith.constant 0 : i32
    %c0_i32_2 = arith.constant 0 : i32
    return %c0_i32, %c0_i32_0, %c0_i32_1 : i32, i32, i32
  }
  func.func @transform_4(%arg0: i32) -> (i32, i32, i32) {
    %c0_i32 = arith.constant 0 : i32
    %c0_i32_0 = arith.constant 0 : i32
    %c0_i32_1 = arith.constant 0 : i32
    %c0_i32_2 = arith.constant 0 : i32
    return %c0_i32, %c0_i32_0, %c0_i32_1 : i32, i32, i32
  }
  func.func @transform_5(%arg0: i32) -> (i32, i32) {
    %c0_i32 = arith.constant 0 : i32
    %c0_i32_0 = arith.constant 0 : i32
    %c0_i32_1 = arith.constant 0 : i32
    return %c0_i32, %c0_i32_0 : i32, i32
  }
  func.func @transform_6(%arg0: i32) -> (i32, i32) {
    %c0_i32 = arith.constant 0 : i32
    %c0_i32_0 = arith.constant 0 : i32
    %c0_i32_1 = arith.constant 0 : i32
    return %c0_i32, %c0_i32_0 : i32, i32
  }
  func.func @transform_7(%arg0: i32) -> (i32, i32) {
    %c0_i32 = arith.constant 0 : i32
    %c0_i32_0 = arith.constant 0 : i32
    return %arg0, %c0_i32 : i32, i32
  }
}

module attributes {stable_mosaic.version = 11 : i64} {
  func.func @_decoder_kernel_resident(%arg0: i32, %arg1: memref<16x128xf32, #tpu.memory_space<vmem>>, %arg2: memref<128x128xf32, #tpu.memory_space<vmem>>, %arg3: memref<1x128xf32, #tpu.memory_space<vmem>>, %arg4: memref<2x128x128xf32, #tpu.memory_space<vmem>>, %arg5: memref<2x1x128xf32, #tpu.memory_space<vmem>>, %arg6: memref<128x128xf32, #tpu.memory_space<vmem>>, %arg7: memref<1x128xf32, #tpu.memory_space<vmem>>, %arg8: memref<16x128xf32, #tpu.memory_space<vmem>>, %arg9: memref<16x128xf32, #tpu.memory_space<vmem>>) attributes {dimension_semantics = [#tpu.dimension_semantics<parallel>], iteration_bounds = array<i64: 1>, scalar_prefetch = 0 : i64, scratch_operands = 1 : i64, tpu.core_type = #tpu.core_type<tc>, window_params = [{transform_indices = @transform_0, window_bounds = array<i64: 16, 128>}, {pipeline_mode = #tpu.pipeline_mode<synchronous>, transform_indices = @transform_1, window_bounds = array<i64: 128, 128>}, {pipeline_mode = #tpu.pipeline_mode<synchronous>, transform_indices = @transform_2, window_bounds = array<i64: 1, 128>}, {pipeline_mode = #tpu.pipeline_mode<synchronous>, transform_indices = @transform_3, window_bounds = array<i64: 2, 128, 128>}, {pipeline_mode = #tpu.pipeline_mode<synchronous>, transform_indices = @transform_4, window_bounds = array<i64: 2, 1, 128>}, {pipeline_mode = #tpu.pipeline_mode<synchronous>, transform_indices = @transform_5, window_bounds = array<i64: 128, 128>}, {pipeline_mode = #tpu.pipeline_mode<synchronous>, transform_indices = @transform_6, window_bounds = array<i64: 1, 128>}, {transform_indices = @transform_7, window_bounds = array<i64: 16, 128>}]} {
    %c0 = arith.constant 0 : index
    %c0_0 = arith.constant 0 : index
    %0 = vector.load %arg1[%c0, %c0_0] : memref<16x128xf32, #tpu.memory_space<vmem>>, vector<16x128xf32>
    %c0_1 = arith.constant 0 : index
    %c0_2 = arith.constant 0 : index
    %1 = vector.load %arg2[%c0_1, %c0_2] : memref<128x128xf32, #tpu.memory_space<vmem>>, vector<128x128xf32>
    %cst = arith.constant dense<0.000000e+00> : vector<16x128xf32>
    %2 = tpu.matmul %0, %1, %cst {dimension_numbers = #tpu.dot_dimension_numbers<[1], [0], [0], [1], [0, 0, 1, 1], [], []>} : vector<16x128xf32>, vector<128x128xf32>, vector<16x128xf32> -> vector<16x128xf32>
    %c0_3 = arith.constant 0 : index
    %c0_4 = arith.constant 0 : index
    %3 = vector.load %arg3[%c0_3, %c0_4] : memref<1x128xf32, #tpu.memory_space<vmem>>, vector<1x128xf32>
    %4 = vector.broadcast %3 : vector<1x128xf32> to vector<16x128xf32>
    %5 = arith.addf %2, %4 : vector<16x128xf32>
    %cst_5 = arith.constant 0.000000e+00 : f32
    %6 = vector.broadcast %cst_5 : f32 to vector<16x128xf32>
    %7 = arith.maximumf %5, %6 : vector<16x128xf32>
    %c0_6 = arith.constant 0 : index
    %c0_7 = arith.constant 0 : index
    %8 = vector.load %arg9[%c0_6, %c0_7] : memref<16x128xf32, #tpu.memory_space<vmem>>, vector<16x128xf32>
    tpu.vector_store %arg9[%c0_6, %c0_7], %7 {strides = array<i32>} : memref<16x128xf32, #tpu.memory_space<vmem>>, vector<16x128xf32>,
    %c0_i32 = arith.constant 0 : i32
    %c0_8 = arith.constant 0 : index
    %c0_9 = arith.constant 0 : index
    %9 = vector.load %arg9[%c0_8, %c0_9] : memref<16x128xf32, #tpu.memory_space<vmem>>, vector<16x128xf32>
    %10 = arith.index_cast %c0_i32 : i32 to index
    %c0_10 = arith.constant 0 : index
    %c0_11 = arith.constant 0 : index
    %11 = vector.load %arg4[%10, %c0_10, %c0_11] : memref<2x128x128xf32, #tpu.memory_space<vmem>>, vector<1x128x128xf32>
    %12 = vector.shape_cast %11 : vector<1x128x128xf32> to vector<128x128xf32>
    %cst_12 = arith.constant dense<0.000000e+00> : vector<16x128xf32>
    %13 = tpu.matmul %9, %12, %cst_12 {dimension_numbers = #tpu.dot_dimension_numbers<[1], [0], [0], [1], [0, 0, 1, 1], [], []>} : vector<16x128xf32>, vector<128x128xf32>, vector<16x128xf32> -> vector<16x128xf32>
    %14 = arith.index_cast %c0_i32 : i32 to index
    %c0_13 = arith.constant 0 : index
    %c0_14 = arith.constant 0 : index
    %15 = vector.load %arg5[%14, %c0_13, %c0_14] : memref<2x1x128xf32, #tpu.memory_space<vmem>>, vector<1x1x128xf32>
    %16 = vector.shape_cast %15 : vector<1x1x128xf32> to vector<1x128xf32>
    %17 = vector.broadcast %16 : vector<1x128xf32> to vector<16x128xf32>
    %18 = arith.addf %13, %17 : vector<16x128xf32>
    %cst_15 = arith.constant 0.000000e+00 : f32
    %19 = vector.broadcast %cst_15 : f32 to vector<16x128xf32>
    %20 = arith.maximumf %18, %19 : vector<16x128xf32>
    %c0_16 = arith.constant 0 : index
    %c0_17 = arith.constant 0 : index
    %21 = vector.load %arg9[%c0_16, %c0_17] : memref<16x128xf32, #tpu.memory_space<vmem>>, vector<16x128xf32>
    tpu.vector_store %arg9[%c0_16, %c0_17], %20 {strides = array<i32>} : memref<16x128xf32, #tpu.memory_space<vmem>>, vector<16x128xf32>,
    %c1_i32 = arith.constant 1 : i32
    %c0_18 = arith.constant 0 : index
    %c0_19 = arith.constant 0 : index
    %22 = vector.load %arg9[%c0_18, %c0_19] : memref<16x128xf32, #tpu.memory_space<vmem>>, vector<16x128xf32>
    %23 = arith.index_cast %c1_i32 : i32 to index
    %c0_20 = arith.constant 0 : index
    %c0_21 = arith.constant 0 : index
    %24 = vector.load %arg4[%23, %c0_20, %c0_21] : memref<2x128x128xf32, #tpu.memory_space<vmem>>, vector<1x128x128xf32>
    %25 = vector.shape_cast %24 : vector<1x128x128xf32> to vector<128x128xf32>
    %cst_22 = arith.constant dense<0.000000e+00> : vector<16x128xf32>
    %26 = tpu.matmul %22, %25, %cst_22 {dimension_numbers = #tpu.dot_dimension_numbers<[1], [0], [0], [1], [0, 0, 1, 1], [], []>} : vector<16x128xf32>, vector<128x128xf32>, vector<16x128xf32> -> vector<16x128xf32>
    %27 = arith.index_cast %c1_i32 : i32 to index
    %c0_23 = arith.constant 0 : index
    %c0_24 = arith.constant 0 : index
    %28 = vector.load %arg5[%27, %c0_23, %c0_24] : memref<2x1x128xf32, #tpu.memory_space<vmem>>, vector<1x1x128xf32>
    %29 = vector.shape_cast %28 : vector<1x1x128xf32> to vector<1x128xf32>
    %30 = vector.broadcast %29 : vector<1x128xf32> to vector<16x128xf32>
    %31 = arith.addf %26, %30 : vector<16x128xf32>
    %cst_25 = arith.constant 0.000000e+00 : f32
    %32 = vector.broadcast %cst_25 : f32 to vector<16x128xf32>
    %33 = arith.maximumf %31, %32 : vector<16x128xf32>
    %c0_26 = arith.constant 0 : index
    %c0_27 = arith.constant 0 : index
    %34 = vector.load %arg9[%c0_26, %c0_27] : memref<16x128xf32, #tpu.memory_space<vmem>>, vector<16x128xf32>
    tpu.vector_store %arg9[%c0_26, %c0_27], %33 {strides = array<i32>} : memref<16x128xf32, #tpu.memory_space<vmem>>, vector<16x128xf32>,
    %c2_i32 = arith.constant 2 : i32
    %c0_28 = arith.constant 0 : index
    %c0_29 = arith.constant 0 : index
    %35 = vector.load %arg9[%c0_28, %c0_29] : memref<16x128xf32, #tpu.memory_space<vmem>>, vector<16x128xf32>
    %c0_30 = arith.constant 0 : index
    %c0_31 = arith.constant 0 : index
    %36 = vector.load %arg6[%c0_30, %c0_31] : memref<128x128xf32, #tpu.memory_space<vmem>>, vector<128x128xf32>
    %cst_32 = arith.constant dense<0.000000e+00> : vector<16x128xf32>
    %37 = tpu.matmul %35, %36, %cst_32 {dimension_numbers = #tpu.dot_dimension_numbers<[1], [0], [0], [1], [0, 0, 1, 1], [], []>} : vector<16x128xf32>, vector<128x128xf32>, vector<16x128xf32> -> vector<16x128xf32>
    %c0_33 = arith.constant 0 : index
    %c0_34 = arith.constant 0 : index
    %38 = vector.load %arg7[%c0_33, %c0_34] : memref<1x128xf32, #tpu.memory_space<vmem>>, vector<1x128xf32>
    %39 = vector.broadcast %38 : vector<1x128xf32> to vector<16x128xf32>
    %40 = arith.addf %37, %39 : vector<16x128xf32>
    %c0_35 = arith.constant 0 : index
    %c0_36 = arith.constant 0 : index
    %41 = vector.load %arg8[%c0_35, %c0_36] : memref<16x128xf32, #tpu.memory_space<vmem>>, vector<16x128xf32>
    tpu.vector_store %arg8[%c0_35, %c0_36], %40 {strides = array<i32>} : memref<16x128xf32, #tpu.memory_space<vmem>>, vector<16x128xf32>,
    return
  }
  func.func @transform_0(%arg0: i32) -> (i32, i32) {
    %c0_i32 = arith.constant 0 : i32
    %c0_i32_0 = arith.constant 0 : i32
    return %arg0, %c0_i32 : i32, i32
  }
  func.func @transform_1(%arg0: i32) -> (i32, i32) {
    %c0_i32 = arith.constant 0 : i32
    %c0_i32_0 = arith.constant 0 : i32
    %c0_i32_1 = arith.constant 0 : i32
    return %c0_i32, %c0_i32_0 : i32, i32
  }
  func.func @transform_2(%arg0: i32) -> (i32, i32) {
    %c0_i32 = arith.constant 0 : i32
    %c0_i32_0 = arith.constant 0 : i32
    %c0_i32_1 = arith.constant 0 : i32
    return %c0_i32, %c0_i32_0 : i32, i32
  }
  func.func @transform_3(%arg0: i32) -> (i32, i32, i32) {
    %c0_i32 = arith.constant 0 : i32
    %c0_i32_0 = arith.constant 0 : i32
    %c0_i32_1 = arith.constant 0 : i32
    %c0_i32_2 = arith.constant 0 : i32
    return %c0_i32, %c0_i32_0, %c0_i32_1 : i32, i32, i32
  }
  func.func @transform_4(%arg0: i32) -> (i32, i32, i32) {
    %c0_i32 = arith.constant 0 : i32
    %c0_i32_0 = arith.constant 0 : i32
    %c0_i32_1 = arith.constant 0 : i32
    %c0_i32_2 = arith.constant 0 : i32
    return %c0_i32, %c0_i32_0, %c0_i32_1 : i32, i32, i32
  }
  func.func @transform_5(%arg0: i32) -> (i32, i32) {
    %c0_i32 = arith.constant 0 : i32
    %c0_i32_0 = arith.constant 0 : i32
    %c0_i32_1 = arith.constant 0 : i32
    return %c0_i32, %c0_i32_0 : i32, i32
  }
  func.func @transform_6(%arg0: i32) -> (i32, i32) {
    %c0_i32 = arith.constant 0 : i32
    %c0_i32_0 = arith.constant 0 : i32
    %c0_i32_1 = arith.constant 0 : i32
    return %c0_i32, %c0_i32_0 : i32, i32
  }
  func.func @transform_7(%arg0: i32) -> (i32, i32) {
    %c0_i32 = arith.constant 0 : i32
    %c0_i32_0 = arith.constant 0 : i32
    return %arg0, %c0_i32 : i32, i32
  }
}

</mosaic_0001>

<llo_original>
// kernel: tpu_custom_call.1
$region0: #{tpu_custom_call.1}
  #allocation0 [shape = 'u32[]', space=smem, size = 0x4, offset = 0x4, fixed_abs, tag = 'smem constant byte address 0x4 - core index']
  #allocation1 [shape = 'u32[144,128]{1,0:T(1,128)}', space=vmem, size = 0x12000, scoped, tag = 'internal scratch']
  #allocation2 [shape = 'f32[16,128]{1,0:T(8,128)}', space=vmem, size = 0x2000, scoped, tag = 'scratch operand']
  %s0 = inlined_call_operand.hbm [shape: f32[16,128], index: 0, kind: input, shape index: {}]
  %s1 = inlined_call_operand.hbm [shape: f32[128,128], index: 1, kind: input, shape index: {}]
  %s2 = inlined_call_operand.vmem [shape: f32[1,128], index: 2, kind: input, shape index: {}]
  %s3 = inlined_call_operand.hbm [shape: f32[2,128,128], index: 3, kind: input, shape index: {}]
  %s4 = inlined_call_operand.vmem [shape: f32[2,1,128], index: 4, kind: input, shape index: {}]
  %s5 = inlined_call_operand.hbm [shape: f32[128,128], index: 5, kind: input, shape index: {}]
  %s6 = inlined_call_operand.vmem [shape: f32[1,128], index: 6, kind: input, shape index: {}]
  %s7 = inlined_call_operand.hbm [shape: f32[16,128], index: 7, kind: output, shape index: {}]
  %s8 = sld [smem:[#allocation0]]
  $region54: #{tpu_custom_call.1} parent=0
    _
  %s10 = ssub.s32 1, %s8
  %s11 = scalar_select 0, %s10, %s8
  $region1: #{tpu_custom_call.1} parent=0
    #allocation3 [shape = 'u8[8192]{0}', space=vmem, size = 0x2000, scoped, tag = 'input window, operand 0, single buffered']
    #allocation4 [shape = 's32[1]{0}', space=sflag, size = 0x4, scoped, tag = 'scoped memory for tpu_custom_call.1']
    #allocation5 [shape = 's32[1]{0}', space=sflag, size = 0x4, scoped, tag = 'scoped memory for tpu_custom_call.1']
    #allocation6 [shape = 'u8[65536]{0}', space=vmem, size = 0x10000, scoped, tag = 'input window, operand 1, single buffered']
    #allocation7 [shape = 's32[1]{0}', space=sflag, size = 0x4, scoped, tag = 'scoped memory for tpu_custom_call.1']
    #allocation8 [shape = 'u8[131072]{0}', space=vmem, size = 0x20000, scoped, tag = 'input window, operand 3, single buffered']
    #allocation9 [shape = 'u8[65536]{0}', space=vmem, size = 0x10000, scoped, tag = 'input window, operand 5, single buffered']
    #allocation10 [shape = 's32[1]{0}', space=sflag, size = 0x4, scoped, tag = 'scoped memory for tpu_custom_call.1']
    #allocation11 [shape = 'u8[8192]{0}', space=vmem, size = 0x2000, scoped, tag = 'output window, operand 0, single buffered']
    %12 = vsyncpa [#allocation4], 0
    %13 = vsyncpa [#allocation7], 0
    %14 = vsyncpa [#allocation10], 0
    %15 = vsyncpa [#allocation5], 0
    // Predicated region
    $region2: #{tpu_custom_call.1} parent=1 // pred_check
      _
    $region3: #{tpu_custom_call.1} parent=1 // pred_check_branch
      %17 = sbr.rel (0) target = $region5
    $region4: #{tpu_custom_call.1} parent=1 // pred_region
      %s19 = ssub.s32 256, 256
      %20 = vsyncadd [#allocation4], %s19
      %s21 = sshll.u32 [#allocation3], 4
      %s22 = int_to_ptr.vmem [resolvable:$true] %s21
      %27 = dma.hbm_to_vmem [thread:$0]  %s0, 256, %s22, [#allocation4], 128, 128, 8
    $region5: #{tpu_custom_call.1} parent=1 // pred_fallthru
      _
    // Predicated region
    $region6: #{tpu_custom_call.1} parent=1 // pred_check
      _
    $region7: #{tpu_custom_call.1} parent=1 // pred_check_branch
      %29 = sbr.rel (0) target = $region9
    $region8: #{tpu_custom_call.1} parent=1 // pred_region
      %s31 = ssub.s32 2048, 2048
      %32 = vsyncadd [#allocation7], %s31
      %s33 = sshll.u32 [#allocation6], 4
      %s34 = int_to_ptr.vmem [resolvable:$true] %s33
      %39 = dma.hbm_to_vmem [thread:$0]  %s1, 2048, %s34, [#allocation7], 128, 128, 8
    $region9: #{tpu_custom_call.1} parent=1 // pred_fallthru
      _
    // Predicated region
    $region10: #{tpu_custom_call.1} parent=1 // pred_check
      _
    $region11: #{tpu_custom_call.1} parent=1 // pred_check_branch
      %41 = sbr.rel (0) target = $region13
    $region12: #{tpu_custom_call.1} parent=1 // pred_region
      _
    $region13: #{tpu_custom_call.1} parent=1 // pred_fallthru
      _
    // Predicated region
    $region14: #{tpu_custom_call.1} parent=1 // pred_check
      _
    $region15: #{tpu_custom_call.1} parent=1 // pred_check_branch
      %43 = sbr.rel (0) target = $region17
    $region16: #{tpu_custom_call.1} parent=1 // pred_region
      %s45 = ssub.s32 4096, 4096
      %46 = vsyncadd [#allocation7], %s45
      %s47 = sshll.u32 [#allocation8], 4
      %s48 = int_to_ptr.vmem [resolvable:$true] %s47
      %53 = dma.hbm_to_vmem [thread:$0]  %s3, 4096, %s48, [#allocation7], 128, 128, 8
    $region17: #{tpu_custom_call.1} parent=1 // pred_fallthru
      _
    // Predicated region
    $region18: #{tpu_custom_call.1} parent=1 // pred_check
      _
    $region19: #{tpu_custom_call.1} parent=1 // pred_check_branch
      %55 = sbr.rel (0) target = $region21
    $region20: #{tpu_custom_call.1} parent=1 // pred_region
      _
    $region21: #{tpu_custom_call.1} parent=1 // pred_fallthru
      _
    // Predicated region
    $region22: #{tpu_custom_call.1} parent=1 // pred_check
      _
    $region23: #{tpu_custom_call.1} parent=1 // pred_check_branch
      %57 = sbr.rel (0) target = $region25
    $region24: #{tpu_custom_call.1} parent=1 // pred_region
      %s59 = ssub.s32 2048, 2048
      %60 = vsyncadd [#allocation10], %s59
      %s61 = sshll.u32 [#allocation9], 4
      %s62 = int_to_ptr.vmem [resolvable:$true] %s61
      %67 = dma.hbm_to_vmem [thread:$0]  %s5, 2048, %s62, [#allocation10], 128, 128, 8
    $region25: #{tpu_custom_call.1} parent=1 // pred_fallthru
      _
    // Predicated region
    $region26: #{tpu_custom_call.1} parent=1 // pred_check
      _
    $region27: #{tpu_custom_call.1} parent=1 // pred_check_branch
      %69 = sbr.rel (0) target = $region29
    $region28: #{tpu_custom_call.1} parent=1 // pred_region
      _
    $region29: #{tpu_custom_call.1} parent=1 // pred_fallthru
      _
    // Predicated region
    $region30: #{tpu_custom_call.1} parent=1 // pred_check
      _
    $region31: #{tpu_custom_call.1} parent=1 // pred_check_branch
      %71 = sbr.rel (0) target = $region33
    $region32: #{tpu_custom_call.1} parent=1 // pred_region
      %72 = dma.done [#allocation4], 256
    $region33: #{tpu_custom_call.1} parent=1 // pred_fallthru
      _
    // Predicated region
    $region34: #{tpu_custom_call.1} parent=1 // pred_check
      _
    $region35: #{tpu_custom_call.1} parent=1 // pred_check_branch
      %74 = sbr.rel (0) target = $region37
    $region36: #{tpu_custom_call.1} parent=1 // pred_region
      %75 = dma.done [#allocation7], 2048
    $region37: #{tpu_custom_call.1} parent=1 // pred_fallthru
      _
    // Predicated region
    $region38: #{tpu_custom_call.1} parent=1 // pred_check
      _
    $region39: #{tpu_custom_call.1} parent=1 // pred_check_branch
      %77 = sbr.rel (0) target = $region41
    $region40: #{tpu_custom_call.1} parent=1 // pred_region
      %78 = dma.done [#allocation7], 4096
    $region41: #{tpu_custom_call.1} parent=1 // pred_fallthru
      _
    // Predicated region
    $region42: #{tpu_custom_call.1} parent=1 // pred_check
      _
    $region43: #{tpu_custom_call.1} parent=1 // pred_check_branch
      %80 = sbr.rel (0) target = $region45
    $region44: #{tpu_custom_call.1} parent=1 // pred_region
      %81 = dma.done [#allocation10], 2048
    $region45: #{tpu_custom_call.1} parent=1 // pred_fallthru
      _
    %v82 = vld [vmem:[#allocation3] sm:$0xff]
    %v83 = vld [vmem:[#allocation3 + $0x8] sm:$0xff]
    %v84 = vld [vmem:[#allocation6] sm:$0xff]
    %v85 = vld [vmem:[#allocation6 + $0x8] sm:$0xff]
    %v86 = vld [vmem:[#allocation6 + $0x10] sm:$0xff]
    %v87 = vld [vmem:[#allocation6 + $0x18] sm:$0xff]
    %v88 = vld [vmem:[#allocation6 + $0x20] sm:$0xff]
    %v89 = vld [vmem:[#allocation6 + $0x28] sm:$0xff]
    %v90 = vld [vmem:[#allocation6 + $0x30] sm:$0xff]
    %v91 = vld [vmem:[#allocation6 + $0x38] sm:$0xff]
    %v92 = vld [vmem:[#allocation6 + $0x40] sm:$0xff]
    %v93 = vld [vmem:[#allocation6 + $0x48] sm:$0xff]
    %v94 = vld [vmem:[#allocation6 + $0x50] sm:$0xff]
    %v95 = vld [vmem:[#allocation6 + $0x58] sm:$0xff]
    %v96 = vld [vmem:[#allocation6 + $0x60] sm:$0xff]
    %v97 = vld [vmem:[#allocation6 + $0x68] sm:$0xff]
    %v98 = vld [vmem:[#allocation6 + $0x70] sm:$0xff]
    %v99 = vld [vmem:[#allocation6 + $0x78] sm:$0xff]
    %v100 = vld [vmem:[%s2] sm:$0x1]
    %v102 = vlaneseq
    %v103 = vshrl.u32 %v102, 7
    %v104 = vsub.s32 0, %v103
    %v105 = vrot.slane %v100, %v104
    %107 = vmatprep.subr.mxu0 0.0
    %108 = vmatpush1.msra.mxu0 %v84
    %109 = vmatprep.subr.mxu0 0.0
    %110 = vmatpush1.msra.mxu0 %v85
    %111 = vmatprep.subr.mxu0 0.0
    %112 = vmatpush1.msra.mxu0 %v86
    %113 = vmatprep.subr.mxu0 0.0
    %114 = vmatpush1.msra.mxu0 %v87
    %115 = vmatprep.subr.mxu0 0.0
    %116 = vmatpush1.msra.mxu0 %v88
    %117 = vmatprep.subr.mxu0 0.0
    %118 = vmatpush1.msra.mxu0 %v89
    %119 = vmatprep.subr.mxu0 0.0
    %120 = vmatpush1.msra.mxu0 %v90
    %121 = vmatprep.subr.mxu0 0.0
    %122 = vmatpush1.msra.mxu0 %v91
    %123 = vmatprep.subr.mxu0 0.0
    %124 = vmatpush1.msra.mxu0 %v92
    %125 = vmatprep.subr.mxu0 0.0
    %126 = vmatpush1.msra.mxu0 %v93
    %127 = vmatprep.subr.mxu0 0.0
    %128 = vmatpush1.msra.mxu0 %v94
    %129 = vmatprep.subr.mxu0 0.0
    %130 = vmatpush1.msra.mxu0 %v95
    %131 = vmatprep.subr.mxu0 0.0
    %132 = vmatpush1.msra.mxu0 %v96
    %133 = vmatprep.subr.mxu0 0.0
    %134 = vmatpush1.msra.mxu0 %v97
    %135 = vmatprep.subr.mxu0 0.0
    %136 = vmatpush1.msra.mxu0 %v98
    %137 = vmatprep.subr.mxu0 0.0
    %138 = vmatpush1.msra.mxu0 %v99
    %139 = vmatprep.subr.mxu0 0.0
    %140 = vmatpush1.msra.mxu0 0.0
    %141 = vmatprep.subr.mxu0 0.0
    %142 = vmatpush1.msra.mxu0 0.0
    %143 = vmatprep.subr.mxu0 0.0
    %144 = vmatpush1.msra.mxu0 0.0
    %145 = vmatprep.subr.mxu0 0.0
    %146 = vmatpush1.msra.mxu0 0.0
    %147 = vmatprep.subr.mxu0 0.0
    %148 = vmatpush1.msra.mxu0 0.0
    %149 = vmatprep.subr.mxu0 0.0
    %150 = vmatpush1.msra.mxu0 0.0
    %151 = vmatprep.subr.mxu0 0.0
    %152 = vmatpush1.msra.mxu0 0.0
    %153 = vmatprep.subr.mxu0 0.0
    %154 = vmatpush1.msra.mxu0 0.0
    %155 = vmatprep.subr.mxu0 0.0
    %156 = vmatpush1.msra.mxu0 0.0
    %157 = vmatprep.subr.mxu0 0.0
    %158 = vmatpush1.msra.mxu0 0.0
    %159 = vmatprep.subr.mxu0 0.0
    %160 = vmatpush1.msra.mxu0 0.0
    %161 = vmatprep.subr.mxu0 0.0
    %162 = vmatpush1.msra.mxu0 0.0
    %163 = vmatprep.subr.mxu0 0.0
    %164 = vmatpush1.msra.mxu0 0.0
    %165 = vmatprep.subr.mxu0 0.0
    %166 = vmatpush1.msra.mxu0 0.0
    %167 = vmatprep.subr.mxu0 0.0
    %168 = vmatpush1.msra.mxu0 0.0
    %169 = vmatprep.subr.mxu0 0.0
    %170 = vmatpush1.msra.mxu0 0.0
    %171 = vmatprep.mubr.f32.mxu0 0.0
    %172 = vmatmul.mubr.f32.gmra.mrb[0].mxu0 %v82
    %v173 = vpop.f32.mrb[0].mxu0
    %v174 = vadd.f32 %v105, %v173
    %v175 = vpop.f32.mrb[0].mxu0
    %176 = vmatprep.mubr.f32.mxu0 0.0
    %177 = vmatmul.mubr.f32.gmra.mrb[0].mxu0 %v83
    %v178 = vpop.f32.mrb[0].mxu0
    %v179 = vadd.f32 %v105, %v178
    %v180 = vpop.f32.mrb[0].mxu0
    %181 = vdwg.mxu0
    %v182 = vmax.f32 %v174, 0.0
    %v183 = vmax.f32 %v179, 0.0
    %184 = vst [vmem:[#allocation2] sm:$0xff] %v182
    %185 = vst [vmem:[#allocation2 + $0x8] sm:$0xff] %v183
    %v186 = vld [vmem:[#allocation2] sm:$0xff]
    %v187 = vld [vmem:[#allocation2 + $0x8] sm:$0xff]
    %v188 = vld [vmem:[#allocation8] sm:$0xff]
    %v189 = vld [vmem:[#allocation8 + $0x8] sm:$0xff]
    %v190 = vld [vmem:[#allocation8 + $0x10] sm:$0xff]
    %v191 = vld [vmem:[#allocation8 + $0x18] sm:$0xff]
    %v192 = vld [vmem:[#allocation8 + $0x20] sm:$0xff]
    %v193 = vld [vmem:[#allocation8 + $0x28] sm:$0xff]
    %v194 = vld [vmem:[#allocation8 + $0x30] sm:$0xff]
    %v195 = vld [vmem:[#allocation8 + $0x38] sm:$0xff]
    %v196 = vld [vmem:[#allocation8 + $0x40] sm:$0xff]
    %v197 = vld [vmem:[#allocation8 + $0x48] sm:$0xff]
    %v198 = vld [vmem:[#allocation8 + $0x50] sm:$0xff]
    %v199 = vld [vmem:[#allocation8 + $0x58] sm:$0xff]
    %v200 = vld [vmem:[#allocation8 + $0x60] sm:$0xff]
    %v201 = vld [vmem:[#allocation8 + $0x68] sm:$0xff]
    %v202 = vld [vmem:[#allocation8 + $0x70] sm:$0xff]
    %v203 = vld [vmem:[#allocation8 + $0x78] sm:$0xff]
    %v204 = vld [vmem:[%s4] sm:$0x1]
    %v206 = vlaneseq
    %v207 = vshrl.u32 %v206, 7
    %v208 = vsub.s32 0, %v207
    %v209 = vrot.slane %v204, %v208
    %211 = vmatprep.subr.mxu0 0.0
    %212 = vmatpush1.msra.mxu0 %v188
    %213 = vmatprep.subr.mxu0 0.0
    %214 = vmatpush1.msra.mxu0 %v189
    %215 = vmatprep.subr.mxu0 0.0
    %216 = vmatpush1.msra.mxu0 %v190
    %217 = vmatprep.subr.mxu0 0.0
    %218 = vmatpush1.msra.mxu0 %v191
    %219 = vmatprep.subr.mxu0 0.0
    %220 = vmatpush1.msra.mxu0 %v192
    %221 = vmatprep.subr.mxu0 0.0
    %222 = vmatpush1.msra.mxu0 %v193
    %223 = vmatprep.subr.mxu0 0.0
    %224 = vmatpush1.msra.mxu0 %v194
    %225 = vmatprep.subr.mxu0 0.0
    %226 = vmatpush1.msra.mxu0 %v195
    %227 = vmatprep.subr.mxu0 0.0
    %228 = vmatpush1.msra.mxu0 %v196
    %229 = vmatprep.subr.mxu0 0.0
    %230 = vmatpush1.msra.mxu0 %v197
    %231 = vmatprep.subr.mxu0 0.0
    %232 = vmatpush1.msra.mxu0 %v198
    %233 = vmatprep.subr.mxu0 0.0
    %234 = vmatpush1.msra.mxu0 %v199
    %235 = vmatprep.subr.mxu0 0.0
    %236 = vmatpush1.msra.mxu0 %v200
    %237 = vmatprep.subr.mxu0 0.0
    %238 = vmatpush1.msra.mxu0 %v201
    %239 = vmatprep.subr.mxu0 0.0
    %240 = vmatpush1.msra.mxu0 %v202
    %241 = vmatprep.subr.mxu0 0.0
    %242 = vmatpush1.msra.mxu0 %v203
    %243 = vmatprep.subr.mxu0 0.0
    %244 = vmatpush1.msra.mxu0 0.0
    %245 = vmatprep.subr.mxu0 0.0
    %246 = vmatpush1.msra.mxu0 0.0
    %247 = vmatprep.subr.mxu0 0.0
    %248 = vmatpush1.msra.mxu0 0.0
    %249 = vmatprep.subr.mxu0 0.0
    %250 = vmatpush1.msra.mxu0 0.0
    %251 = vmatprep.subr.mxu0 0.0
    %252 = vmatpush1.msra.mxu0 0.0
    %253 = vmatprep.subr.mxu0 0.0
    %254 = vmatpush1.msra.mxu0 0.0
    %255 = vmatprep.subr.mxu0 0.0
    %256 = vmatpush1.msra.mxu0 0.0
    %257 = vmatprep.subr.mxu0 0.0
    %258 = vmatpush1.msra.mxu0 0.0
    %259 = vmatprep.subr.mxu0 0.0
    %260 = vmatpush1.msra.mxu0 0.0
    %261 = vmatprep.subr.mxu0 0.0
    %262 = vmatpush1.msra.mxu0 0.0
    %263 = vmatprep.subr.mxu0 0.0
    %264 = vmatpush1.msra.mxu0 0.0
    %265 = vmatprep.subr.mxu0 0.0
    %266 = vmatpush1.msra.mxu0 0.0
    %267 = vmatprep.subr.mxu0 0.0
    %268 = vmatpush1.msra.mxu0 0.0
    %269 = vmatprep.subr.mxu0 0.0
    %270 = vmatpush1.msra.mxu0 0.0
    %271 = vmatprep.subr.mxu0 0.0
    %272 = vmatpush1.msra.mxu0 0.0
    %273 = vmatprep.subr.mxu0 0.0
    %274 = vmatpush1.msra.mxu0 0.0
    %275 = vmatprep.mubr.f32.mxu0 0.0
    %276 = vmatmul.mubr.f32.gmra.mrb[0].mxu0 %v186
    %v277 = vpop.f32.mrb[0].mxu0
    %v278 = vadd.f32 %v209, %v277
    %v279 = vpop.f32.mrb[0].mxu0
    %280 = vmatprep.mubr.f32.mxu0 0.0
    %281 = vmatmul.mubr.f32.gmra.mrb[0].mxu0 %v187
    %v282 = vpop.f32.mrb[0].mxu0
    %v283 = vadd.f32 %v209, %v282
    %v284 = vpop.f32.mrb[0].mxu0
    %285 = vdwg.mxu0
    %v286 = vmax.f32 %v278, 0.0
    %v287 = vmax.f32 %v283, 0.0
    %288 = vst [vmem:[#allocation2] sm:$0xff] %v286
    %289 = vst [vmem:[#allocation2 + $0x8] sm:$0xff] %v287
    %v290 = vld [vmem:[#allocation2] sm:$0xff]
    %v291 = vld [vmem:[#allocation2 + $0x8] sm:$0xff]
    %s292 = scalar_lea.vmem [#allocation8], 128
    %v293 = vld [vmem:[%s292] sm:$0xff]
    %v294 = vld [vmem:[%s292 + $0x8] sm:$0xff]
    %v295 = vld [vmem:[%s292 + $0x10] sm:$0xff]
    %v296 = vld [vmem:[%s292 + $0x18] sm:$0xff]
    %v297 = vld [vmem:[%s292 + $0x20] sm:$0xff]
    %v298 = vld [vmem:[%s292 + $0x28] sm:$0xff]
    %v299 = vld [vmem:[%s292 + $0x30] sm:$0xff]
    %v300 = vld [vmem:[%s292 + $0x38] sm:$0xff]
    %v301 = vld [vmem:[%s292 + $0x40] sm:$0xff]
    %v302 = vld [vmem:[%s292 + $0x48] sm:$0xff]
    %v303 = vld [vmem:[%s292 + $0x50] sm:$0xff]
    %v304 = vld [vmem:[%s292 + $0x58] sm:$0xff]
    %v305 = vld [vmem:[%s292 + $0x60] sm:$0xff]
    %v306 = vld [vmem:[%s292 + $0x68] sm:$0xff]
    %v307 = vld [vmem:[%s292 + $0x70] sm:$0xff]
    %v308 = vld [vmem:[%s292 + $0x78] sm:$0xff]
    %s309 = scalar_lea.vmem %s4, 1
    %v310 = vld [vmem:[%s309] sm:$0x1]
    %v312 = vlaneseq
    %v313 = vshrl.u32 %v312, 7
    %v314 = vsub.s32 0, %v313
    %v315 = vrot.slane %v310, %v314
    %317 = vmatprep.subr.mxu0 0.0
    %318 = vmatpush1.msra.mxu0 %v293
    %319 = vmatprep.subr.mxu0 0.0
    %320 = vmatpush1.msra.mxu0 %v294
    %321 = vmatprep.subr.mxu0 0.0
    %322 = vmatpush1.msra.mxu0 %v295
    %323 = vmatprep.subr.mxu0 0.0
    %324 = vmatpush1.msra.mxu0 %v296
    %325 = vmatprep.subr.mxu0 0.0
    %326 = vmatpush1.msra.mxu0 %v297
    %327 = vmatprep.subr.mxu0 0.0
    %328 = vmatpush1.msra.mxu0 %v298
    %329 = vmatprep.subr.mxu0 0.0
    %330 = vmatpush1.msra.mxu0 %v299
    %331 = vmatprep.subr.mxu0 0.0
    %332 = vmatpush1.msra.mxu0 %v300
    %333 = vmatprep.subr.mxu0 0.0
    %334 = vmatpush1.msra.mxu0 %v301
    %335 = vmatprep.subr.mxu0 0.0
    %336 = vmatpush1.msra.mxu0 %v302
    %337 = vmatprep.subr.mxu0 0.0
    %338 = vmatpush1.msra.mxu0 %v303
    %339 = vmatprep.subr.mxu0 0.0
    %340 = vmatpush1.msra.mxu0 %v304
    %341 = vmatprep.subr.mxu0 0.0
    %342 = vmatpush1.msra.mxu0 %v305
    %343 = vmatprep.subr.mxu0 0.0
    %344 = vmatpush1.msra.mxu0 %v306
    %345 = vmatprep.subr.mxu0 0.0
    %346 = vmatpush1.msra.mxu0 %v307
    %347 = vmatprep.subr.mxu0 0.0
    %348 = vmatpush1.msra.mxu0 %v308
    %349 = vmatprep.subr.mxu0 0.0
    %350 = vmatpush1.msra.mxu0 0.0
    %351 = vmatprep.subr.mxu0 0.0
    %352 = vmatpush1.msra.mxu0 0.0
    %353 = vmatprep.subr.mxu0 0.0
    %354 = vmatpush1.msra.mxu0 0.0
    %355 = vmatprep.subr.mxu0 0.0
    %356 = vmatpush1.msra.mxu0 0.0
    %357 = vmatprep.subr.mxu0 0.0
    %358 = vmatpush1.msra.mxu0 0.0
    %359 = vmatprep.subr.mxu0 0.0
    %360 = vmatpush1.msra.mxu0 0.0
    %361 = vmatprep.subr.mxu0 0.0
    %362 = vmatpush1.msra.mxu0 0.0
    %363 = vmatprep.subr.mxu0 0.0
    %364 = vmatpush1.msra.mxu0 0.0
    %365 = vmatprep.subr.mxu0 0.0
    %366 = vmatpush1.msra.mxu0 0.0
    %367 = vmatprep.subr.mxu0 0.0
    %368 = vmatpush1.msra.mxu0 0.0
    %369 = vmatprep.subr.mxu0 0.0
    %370 = vmatpush1.msra.mxu0 0.0
    %371 = vmatprep.subr.mxu0 0.0
    %372 = vmatpush1.msra.mxu0 0.0
    %373 = vmatprep.subr.mxu0 0.0
    %374 = vmatpush1.msra.mxu0 0.0
    %375 = vmatprep.subr.mxu0 0.0
    %376 = vmatpush1.msra.mxu0 0.0
    %377 = vmatprep.subr.mxu0 0.0
    %378 = vmatpush1.msra.mxu0 0.0
    %379 = vmatprep.subr.mxu0 0.0
    %380 = vmatpush1.msra.mxu0 0.0
    %381 = vmatprep.mubr.f32.mxu0 0.0
    %382 = vmatmul.mubr.f32.gmra.mrb[0].mxu0 %v290
    %v383 = vpop.f32.mrb[0].mxu0
    %v384 = vadd.f32 %v315, %v383
    %v385 = vpop.f32.mrb[0].mxu0
    %386 = vmatprep.mubr.f32.mxu0 0.0
    %387 = vmatmul.mubr.f32.gmra.mrb[0].mxu0 %v291
    %v388 = vpop.f32.mrb[0].mxu0
    %v389 = vadd.f32 %v315, %v388
    %v390 = vpop.f32.mrb[0].mxu0
    %391 = vdwg.mxu0
    %v392 = vmax.f32 %v384, 0.0
    %v393 = vmax.f32 %v389, 0.0
    %394 = vst [vmem:[#allocation2] sm:$0xff] %v392
    %395 = vst [vmem:[#allocation2 + $0x8] sm:$0xff] %v393
    %v396 = vld [vmem:[#allocation2] sm:$0xff]
    %v397 = vld [vmem:[#allocation2 + $0x8] sm:$0xff]
    %v398 = vld [vmem:[#allocation9] sm:$0xff]
    %v399 = vld [vmem:[#allocation9 + $0x8] sm:$0xff]
    %v400 = vld [vmem:[#allocation9 + $0x10] sm:$0xff]
    %v401 = vld [vmem:[#allocation9 + $0x18] sm:$0xff]
    %v402 = vld [vmem:[#allocation9 + $0x20] sm:$0xff]
    %v403 = vld [vmem:[#allocation9 + $0x28] sm:$0xff]
    %v404 = vld [vmem:[#allocation9 + $0x30] sm:$0xff]
    %v405 = vld [vmem:[#allocation9 + $0x38] sm:$0xff]
    %v406 = vld [vmem:[#allocation9 + $0x40] sm:$0xff]
    %v407 = vld [vmem:[#allocation9 + $0x48] sm:$0xff]
    %v408 = vld [vmem:[#allocation9 + $0x50] sm:$0xff]
    %v409 = vld [vmem:[#allocation9 + $0x58] sm:$0xff]
    %v410 = vld [vmem:[#allocation9 + $0x60] sm:$0xff]
    %v411 = vld [vmem:[#allocation9 + $0x68] sm:$0xff]
    %v412 = vld [vmem:[#allocation9 + $0x70] sm:$0xff]
    %v413 = vld [vmem:[#allocation9 + $0x78] sm:$0xff]
    %v414 = vld [vmem:[%s6] sm:$0x1]
    %v416 = vlaneseq
    %v417 = vshrl.u32 %v416, 7
    %v418 = vsub.s32 0, %v417
    %v419 = vrot.slane %v414, %v418
    %421 = vmatprep.subr.mxu0 0.0
    %422 = vmatpush1.msra.mxu0 %v398
    %423 = vmatprep.subr.mxu0 0.0
    %424 = vmatpush1.msra.mxu0 %v399
    %425 = vmatprep.subr.mxu0 0.0
    %426 = vmatpush1.msra.mxu0 %v400
    %427 = vmatprep.subr.mxu0 0.0
    %428 = vmatpush1.msra.mxu0 %v401
    %429 = vmatprep.subr.mxu0 0.0
    %430 = vmatpush1.msra.mxu0 %v402
    %431 = vmatprep.subr.mxu0 0.0
    %432 = vmatpush1.msra.mxu0 %v403
    %433 = vmatprep.subr.mxu0 0.0
    %434 = vmatpush1.msra.mxu0 %v404
    %435 = vmatprep.subr.mxu0 0.0
    %436 = vmatpush1.msra.mxu0 %v405
    %437 = vmatprep.subr.mxu0 0.0
    %438 = vmatpush1.msra.mxu0 %v406
    %439 = vmatprep.subr.mxu0 0.0
    %440 = vmatpush1.msra.mxu0 %v407
    %441 = vmatprep.subr.mxu0 0.0
    %442 = vmatpush1.msra.mxu0 %v408
    %443 = vmatprep.subr.mxu0 0.0
    %444 = vmatpush1.msra.mxu0 %v409
    %445 = vmatprep.subr.mxu0 0.0
    %446 = vmatpush1.msra.mxu0 %v410
    %447 = vmatprep.subr.mxu0 0.0
    %448 = vmatpush1.msra.mxu0 %v411
    %449 = vmatprep.subr.mxu0 0.0
    %450 = vmatpush1.msra.mxu0 %v412
    %451 = vmatprep.subr.mxu0 0.0
    %452 = vmatpush1.msra.mxu0 %v413
    %453 = vmatprep.subr.mxu0 0.0
    %454 = vmatpush1.msra.mxu0 0.0
    %455 = vmatprep.subr.mxu0 0.0
    %456 = vmatpush1.msra.mxu0 0.0
    %457 = vmatprep.subr.mxu0 0.0
    %458 = vmatpush1.msra.mxu0 0.0
    %459 = vmatprep.subr.mxu0 0.0
    %460 = vmatpush1.msra.mxu0 0.0
    %461 = vmatprep.subr.mxu0 0.0
    %462 = vmatpush1.msra.mxu0 0.0
    %463 = vmatprep.subr.mxu0 0.0
    %464 = vmatpush1.msra.mxu0 0.0
    %465 = vmatprep.subr.mxu0 0.0
    %466 = vmatpush1.msra.mxu0 0.0
    %467 = vmatprep.subr.mxu0 0.0
    %468 = vmatpush1.msra.mxu0 0.0
    %469 = vmatprep.subr.mxu0 0.0
    %470 = vmatpush1.msra.mxu0 0.0
    %471 = vmatprep.subr.mxu0 0.0
    %472 = vmatpush1.msra.mxu0 0.0
    %473 = vmatprep.subr.mxu0 0.0
    %474 = vmatpush1.msra.mxu0 0.0
    %475 = vmatprep.subr.mxu0 0.0
    %476 = vmatpush1.msra.mxu0 0.0
    %477 = vmatprep.subr.mxu0 0.0
    %478 = vmatpush1.msra.mxu0 0.0
    %479 = vmatprep.subr.mxu0 0.0
    %480 = vmatpush1.msra.mxu0 0.0
    %481 = vmatprep.subr.mxu0 0.0
    %482 = vmatpush1.msra.mxu0 0.0
    %483 = vmatprep.subr.mxu0 0.0
    %484 = vmatpush1.msra.mxu0 0.0
    %485 = vmatprep.mubr.f32.mxu0 0.0
    %486 = vmatmul.mubr.f32.gmra.mrb[0].mxu0 %v396
    %v487 = vpop.f32.mrb[0].mxu0
    %v488 = vadd.f32 %v419, %v487
    %v489 = vpop.f32.mrb[0].mxu0
    %490 = vmatprep.mubr.f32.mxu0 0.0
    %491 = vmatmul.mubr.f32.gmra.mrb[0].mxu0 %v397
    %v492 = vpop.f32.mrb[0].mxu0
    %v493 = vadd.f32 %v419, %v492
    %v494 = vpop.f32.mrb[0].mxu0
    %495 = vdwg.mxu0
    %496 = vst [vmem:[#allocation11] sm:$0xff] %v488
    %497 = vst [vmem:[#allocation11 + $0x8] sm:$0xff] %v493
    // Predicated region
    $region46: #{tpu_custom_call.1} parent=1 // pred_check
      _
    $region47: #{tpu_custom_call.1} parent=1 // pred_check_branch
      %499 = sbr.rel (0) target = $region49
    $region48: #{tpu_custom_call.1} parent=1 // pred_region
      %s501 = ssub.s32 256, 256
      %502 = vsyncadd [#allocation5], %s501
      %s503 = sshll.u32 [#allocation11], 4
      %s504 = int_to_ptr.vmem [resolvable:$true] %s503
      %509 = dma.vmem_to_hbm [thread:$0]  %s504, 256, %s7, [#allocation5], 128, 128, 8
    $region49: #{tpu_custom_call.1} parent=1 // pred_fallthru
      _
    // Predicated region
    $region50: #{tpu_custom_call.1} parent=1 // pred_check
      _
    $region51: #{tpu_custom_call.1} parent=1 // pred_check_branch
      %511 = sbr.rel (0) target = $region53
    $region52: #{tpu_custom_call.1} parent=1 // pred_region
      %512 = dma.done [#allocation5], 256
    $region53: #{tpu_custom_call.1} parent=1 // pred_fallthru
      _
    %513 = vsyncpa [#allocation4], 1
    %514 = vsyncpa [#allocation7], 1
    %515 = vsyncpa [#allocation10], 1
    %516 = vsyncpa [#allocation5], 1

// kernel: tpu_custom_call.1
$region0: #{tpu_custom_call.1}
  #allocation0 [shape = 'u32[]', space=smem, size = 0x4, offset = 0x4, fixed_abs, tag = 'smem constant byte address 0x4 - core index']
  #allocation1 [shape = 'u32[144,128]{1,0:T(1,128)}', space=vmem, size = 0x12000, scoped, tag = 'internal scratch']
  #allocation2 [shape = 'f32[16,128]{1,0:T(8,128)}', space=vmem, size = 0x2000, scoped, tag = 'scratch operand']
  %s0 = inlined_call_operand.hbm [shape: f32[16,128], index: 0, kind: input, shape index: {}]
  %s1 = inlined_call_operand.hbm [shape: f32[128,128], index: 1, kind: input, shape index: {}]
  %s2 = inlined_call_operand.vmem [shape: f32[1,128], index: 2, kind: input, shape index: {}]
  %s3 = inlined_call_operand.hbm [shape: f32[2,128,128], index: 3, kind: input, shape index: {}]
  %s4 = inlined_call_operand.vmem [shape: f32[2,1,128], index: 4, kind: input, shape index: {}]
  %s5 = inlined_call_operand.hbm [shape: f32[128,128], index: 5, kind: input, shape index: {}]
  %s6 = inlined_call_operand.vmem [shape: f32[1,128], index: 6, kind: input, shape index: {}]
  %s7 = inlined_call_operand.hbm [shape: f32[16,128], index: 7, kind: output, shape index: {}]
  %s8 = sld [smem:[#allocation0]]
  $region54: #{tpu_custom_call.1} parent=0
    _
  %s10 = ssub.s32 1, %s8
  %s11 = scalar_select 0, %s10, %s8
  $region1: #{tpu_custom_call.1} parent=0
    #allocation3 [shape = 'u8[8192]{0}', space=vmem, size = 0x2000, scoped, tag = 'input window, operand 0, single buffered']
    #allocation4 [shape = 's32[1]{0}', space=sflag, size = 0x4, scoped, tag = 'scoped memory for tpu_custom_call.1']
    #allocation5 [shape = 's32[1]{0}', space=sflag, size = 0x4, scoped, tag = 'scoped memory for tpu_custom_call.1']
    #allocation6 [shape = 'u8[65536]{0}', space=vmem, size = 0x10000, scoped, tag = 'input window, operand 1, single buffered']
    #allocation7 [shape = 's32[1]{0}', space=sflag, size = 0x4, scoped, tag = 'scoped memory for tpu_custom_call.1']
    #allocation8 [shape = 'u8[131072]{0}', space=vmem, size = 0x20000, scoped, tag = 'input window, operand 3, single buffered']
    #allocation9 [shape = 'u8[65536]{0}', space=vmem, size = 0x10000, scoped, tag = 'input window, operand 5, single buffered']
    #allocation10 [shape = 's32[1]{0}', space=sflag, size = 0x4, scoped, tag = 'scoped memory for tpu_custom_call.1']
    #allocation11 [shape = 'u8[8192]{0}', space=vmem, size = 0x2000, scoped, tag = 'output window, operand 0, single buffered']
    %12 = vsyncpa [#allocation4], 0
    %13 = vsyncpa [#allocation7], 0
    %14 = vsyncpa [#allocation10], 0
    %15 = vsyncpa [#allocation5], 0
    // Predicated region
    $region2: #{tpu_custom_call.1} parent=1 // pred_check
      _
    $region3: #{tpu_custom_call.1} parent=1 // pred_check_branch
      %17 = sbr.rel (0) target = $region5
    $region4: #{tpu_custom_call.1} parent=1 // pred_region
      %s19 = ssub.s32 256, 256
      %20 = vsyncadd [#allocation4], %s19
      %s21 = sshll.u32 [#allocation3], 4
      %s22 = int_to_ptr.vmem [resolvable:$true] %s21
      %27 = dma.hbm_to_vmem [thread:$0]  %s0, 256, %s22, [#allocation4], 128, 128, 8
    $region5: #{tpu_custom_call.1} parent=1 // pred_fallthru
      _
    // Predicated region
    $region6: #{tpu_custom_call.1} parent=1 // pred_check
      _
    $region7: #{tpu_custom_call.1} parent=1 // pred_check_branch
      %29 = sbr.rel (0) target = $region9
    $region8: #{tpu_custom_call.1} parent=1 // pred_region
      %s31 = ssub.s32 2048, 2048
      %32 = vsyncadd [#allocation7], %s31
      %s33 = sshll.u32 [#allocation6], 4
      %s34 = int_to_ptr.vmem [resolvable:$true] %s33
      %39 = dma.hbm_to_vmem [thread:$0]  %s1, 2048, %s34, [#allocation7], 128, 128, 8
    $region9: #{tpu_custom_call.1} parent=1 // pred_fallthru
      _
    // Predicated region
    $region10: #{tpu_custom_call.1} parent=1 // pred_check
      _
    $region11: #{tpu_custom_call.1} parent=1 // pred_check_branch
      %41 = sbr.rel (0) target = $region13
    $region12: #{tpu_custom_call.1} parent=1 // pred_region
      _
    $region13: #{tpu_custom_call.1} parent=1 // pred_fallthru
      _
    // Predicated region
    $region14: #{tpu_custom_call.1} parent=1 // pred_check
      _
    $region15: #{tpu_custom_call.1} parent=1 // pred_check_branch
      %43 = sbr.rel (0) target = $region17
    $region16: #{tpu_custom_call.1} parent=1 // pred_region
      %s45 = ssub.s32 4096, 4096
      %46 = vsyncadd [#allocation7], %s45
      %s47 = sshll.u32 [#allocation8], 4
      %s48 = int_to_ptr.vmem [resolvable:$true] %s47
      %53 = dma.hbm_to_vmem [thread:$0]  %s3, 4096, %s48, [#allocation7], 128, 128, 8
    $region17: #{tpu_custom_call.1} parent=1 // pred_fallthru
      _
    // Predicated region
    $region18: #{tpu_custom_call.1} parent=1 // pred_check
      _
    $region19: #{tpu_custom_call.1} parent=1 // pred_check_branch
      %55 = sbr.rel (0) target = $region21
    $region20: #{tpu_custom_call.1} parent=1 // pred_region
      _
    $region21: #{tpu_custom_call.1} parent=1 // pred_fallthru
      _
    // Predicated region
    $region22: #{tpu_custom_call.1} parent=1 // pred_check
      _
    $region23: #{tpu_custom_call.1} parent=1 // pred_check_branch
      %57 = sbr.rel (0) target = $region25
    $region24: #{tpu_custom_call.1} parent=1 // pred_region
      %s59 = ssub.s32 2048, 2048
      %60 = vsyncadd [#allocation10], %s59
      %s61 = sshll.u32 [#allocation9], 4
      %s62 = int_to_ptr.vmem [resolvable:$true] %s61
      %67 = dma.hbm_to_vmem [thread:$0]  %s5, 2048, %s62, [#allocation10], 128, 128, 8
    $region25: #{tpu_custom_call.1} parent=1 // pred_fallthru
      _
    // Predicated region
    $region26: #{tpu_custom_call.1} parent=1 // pred_check
      _
    $region27: #{tpu_custom_call.1} parent=1 // pred_check_branch
      %69 = sbr.rel (0) target = $region29
    $region28: #{tpu_custom_call.1} parent=1 // pred_region
      _
    $region29: #{tpu_custom_call.1} parent=1 // pred_fallthru
      _
    // Predicated region
    $region30: #{tpu_custom_call.1} parent=1 // pred_check
      _
    $region31: #{tpu_custom_call.1} parent=1 // pred_check_branch
      %71 = sbr.rel (0) target = $region33
    $region32: #{tpu_custom_call.1} parent=1 // pred_region
      %72 = dma.done [#allocation4], 256
    $region33: #{tpu_custom_call.1} parent=1 // pred_fallthru
      _
    // Predicated region
    $region34: #{tpu_custom_call.1} parent=1 // pred_check
      _
    $region35: #{tpu_custom_call.1} parent=1 // pred_check_branch
      %74 = sbr.rel (0) target = $region37
    $region36: #{tpu_custom_call.1} parent=1 // pred_region
      %75 = dma.done [#allocation7], 2048
    $region37: #{tpu_custom_call.1} parent=1 // pred_fallthru
      _
    // Predicated region
    $region38: #{tpu_custom_call.1} parent=1 // pred_check
      _
    $region39: #{tpu_custom_call.1} parent=1 // pred_check_branch
      %77 = sbr.rel (0) target = $region41
    $region40: #{tpu_custom_call.1} parent=1 // pred_region
      %78 = dma.done [#allocation7], 4096
    $region41: #{tpu_custom_call.1} parent=1 // pred_fallthru
      _
    // Predicated region
    $region42: #{tpu_custom_call.1} parent=1 // pred_check
      _
    $region43: #{tpu_custom_call.1} parent=1 // pred_check_branch
      %80 = sbr.rel (0) target = $region45
    $region44: #{tpu_custom_call.1} parent=1 // pred_region
      %81 = dma.done [#allocation10], 2048
    $region45: #{tpu_custom_call.1} parent=1 // pred_fallthru
      _
    %v82 = vld [vmem:[#allocation3] sm:$0xff]
    %v83 = vld [vmem:[#allocation3 + $0x8] sm:$0xff]
    %v84 = vld [vmem:[#allocation6] sm:$0xff]
    %v85 = vld [vmem:[#allocation6 + $0x8] sm:$0xff]
    %v86 = vld [vmem:[#allocation6 + $0x10] sm:$0xff]
    %v87 = vld [vmem:[#allocation6 + $0x18] sm:$0xff]
    %v88 = vld [vmem:[#allocation6 + $0x20] sm:$0xff]
    %v89 = vld [vmem:[#allocation6 + $0x28] sm:$0xff]
    %v90 = vld [vmem:[#allocation6 + $0x30] sm:$0xff]
    %v91 = vld [vmem:[#allocation6 + $0x38] sm:$0xff]
    %v92 = vld [vmem:[#allocation6 + $0x40] sm:$0xff]
    %v93 = vld [vmem:[#allocation6 + $0x48] sm:$0xff]
    %v94 = vld [vmem:[#allocation6 + $0x50] sm:$0xff]
    %v95 = vld [vmem:[#allocation6 + $0x58] sm:$0xff]
    %v96 = vld [vmem:[#allocation6 + $0x60] sm:$0xff]
    %v97 = vld [vmem:[#allocation6 + $0x68] sm:$0xff]
    %v98 = vld [vmem:[#allocation6 + $0x70] sm:$0xff]
    %v99 = vld [vmem:[#allocation6 + $0x78] sm:$0xff]
    %v100 = vld [vmem:[%s2] sm:$0x1]
    %v102 = vlaneseq
    %v103 = vshrl.u32 %v102, 7
    %v104 = vsub.s32 0, %v103
    %v105 = vrot.slane %v100, %v104
    %107 = vmatprep.subr.mxu0 0.0
    %108 = vmatpush1.msra.mxu0 %v84
    %109 = vmatprep.subr.mxu0 0.0
    %110 = vmatpush1.msra.mxu0 %v85
    %111 = vmatprep.subr.mxu0 0.0
    %112 = vmatpush1.msra.mxu0 %v86
    %113 = vmatprep.subr.mxu0 0.0
    %114 = vmatpush1.msra.mxu0 %v87
    %115 = vmatprep.subr.mxu0 0.0
    %116 = vmatpush1.msra.mxu0 %v88
    %117 = vmatprep.subr.mxu0 0.0
    %118 = vmatpush1.msra.mxu0 %v89
    %119 = vmatprep.subr.mxu0 0.0
    %120 = vmatpush1.msra.mxu0 %v90
    %121 = vmatprep.subr.mxu0 0.0
    %122 = vmatpush1.msra.mxu0 %v91
    %123 = vmatprep.subr.mxu0 0.0
    %124 = vmatpush1.msra.mxu0 %v92
    %125 = vmatprep.subr.mxu0 0.0
    %126 = vmatpush1.msra.mxu0 %v93
    %127 = vmatprep.subr.mxu0 0.0
    %128 = vmatpush1.msra.mxu0 %v94
    %129 = vmatprep.subr.mxu0 0.0
    %130 = vmatpush1.msra.mxu0 %v95
    %131 = vmatprep.subr.mxu0 0.0
    %132 = vmatpush1.msra.mxu0 %v96
    %133 = vmatprep.subr.mxu0 0.0
    %134 = vmatpush1.msra.mxu0 %v97
    %135 = vmatprep.subr.mxu0 0.0
    %136 = vmatpush1.msra.mxu0 %v98
    %137 = vmatprep.subr.mxu0 0.0
    %138 = vmatpush1.msra.mxu0 %v99
    %139 = vmatprep.subr.mxu0 0.0
    %140 = vmatpush1.msra.mxu0 0.0
    %141 = vmatprep.subr.mxu0 0.0
    %142 = vmatpush1.msra.mxu0 0.0
    %143 = vmatprep.subr.mxu0 0.0
    %144 = vmatpush1.msra.mxu0 0.0
    %145 = vmatprep.subr.mxu0 0.0
    %146 = vmatpush1.msra.mxu0 0.0
    %147 = vmatprep.subr.mxu0 0.0
    %148 = vmatpush1.msra.mxu0 0.0
    %149 = vmatprep.subr.mxu0 0.0
    %150 = vmatpush1.msra.mxu0 0.0
    %151 = vmatprep.subr.mxu0 0.0
    %152 = vmatpush1.msra.mxu0 0.0
    %153 = vmatprep.subr.mxu0 0.0
    %154 = vmatpush1.msra.mxu0 0.0
    %155 = vmatprep.subr.mxu0 0.0
    %156 = vmatpush1.msra.mxu0 0.0
    %157 = vmatprep.subr.mxu0 0.0
    %158 = vmatpush1.msra.mxu0 0.0
    %159 = vmatprep.subr.mxu0 0.0
    %160 = vmatpush1.msra.mxu0 0.0
    %161 = vmatprep.subr.mxu0 0.0
    %162 = vmatpush1.msra.mxu0 0.0
    %163 = vmatprep.subr.mxu0 0.0
    %164 = vmatpush1.msra.mxu0 0.0
    %165 = vmatprep.subr.mxu0 0.0
    %166 = vmatpush1.msra.mxu0 0.0
    %167 = vmatprep.subr.mxu0 0.0
    %168 = vmatpush1.msra.mxu0 0.0
    %169 = vmatprep.subr.mxu0 0.0
    %170 = vmatpush1.msra.mxu0 0.0
    %171 = vmatprep.mubr.f32.mxu0 0.0
    %172 = vmatmul.mubr.f32.gmra.mrb[0].mxu0 %v82
    %v173 = vpop.f32.mrb[0].mxu0
    %v174 = vadd.f32 %v105, %v173
    %v175 = vpop.f32.mrb[0].mxu0
    %176 = vmatprep.mubr.f32.mxu0 0.0
    %177 = vmatmul.mubr.f32.gmra.mrb[0].mxu0 %v83
    %v178 = vpop.f32.mrb[0].mxu0
    %v179 = vadd.f32 %v105, %v178
    %v180 = vpop.f32.mrb[0].mxu0
    %181 = vdwg.mxu0
    %v182 = vmax.f32 %v174, 0.0
    %v183 = vmax.f32 %v179, 0.0
    %184 = vst [vmem:[#allocation2] sm:$0xff] %v182
    %185 = vst [vmem:[#allocation2 + $0x8] sm:$0xff] %v183
    %v186 = vld [vmem:[#allocation2] sm:$0xff]
    %v187 = vld [vmem:[#allocation2 + $0x8] sm:$0xff]
    %v188 = vld [vmem:[#allocation8] sm:$0xff]
    %v189 = vld [vmem:[#allocation8 + $0x8] sm:$0xff]
    %v190 = vld [vmem:[#allocation8 + $0x10] sm:$0xff]
    %v191 = vld [vmem:[#allocation8 + $0x18] sm:$0xff]
    %v192 = vld [vmem:[#allocation8 + $0x20] sm:$0xff]
    %v193 = vld [vmem:[#allocation8 + $0x28] sm:$0xff]
    %v194 = vld [vmem:[#allocation8 + $0x30] sm:$0xff]
    %v195 = vld [vmem:[#allocation8 + $0x38] sm:$0xff]
    %v196 = vld [vmem:[#allocation8 + $0x40] sm:$0xff]
    %v197 = vld [vmem:[#allocation8 + $0x48] sm:$0xff]
    %v198 = vld [vmem:[#allocation8 + $0x50] sm:$0xff]
    %v199 = vld [vmem:[#allocation8 + $0x58] sm:$0xff]
    %v200 = vld [vmem:[#allocation8 + $0x60] sm:$0xff]
    %v201 = vld [vmem:[#allocation8 + $0x68] sm:$0xff]
    %v202 = vld [vmem:[#allocation8 + $0x70] sm:$0xff]
    %v203 = vld [vmem:[#allocation8 + $0x78] sm:$0xff]
    %v204 = vld [vmem:[%s4] sm:$0x1]
    %v206 = vlaneseq
    %v207 = vshrl.u32 %v206, 7
    %v208 = vsub.s32 0, %v207
    %v209 = vrot.slane %v204, %v208
    %211 = vmatprep.subr.mxu0 0.0
    %212 = vmatpush1.msra.mxu0 %v188
    %213 = vmatprep.subr.mxu0 0.0
    %214 = vmatpush1.msra.mxu0 %v189
    %215 = vmatprep.subr.mxu0 0.0
    %216 = vmatpush1.msra.mxu0 %v190
    %217 = vmatprep.subr.mxu0 0.0
    %218 = vmatpush1.msra.mxu0 %v191
    %219 = vmatprep.subr.mxu0 0.0
    %220 = vmatpush1.msra.mxu0 %v192
    %221 = vmatprep.subr.mxu0 0.0
    %222 = vmatpush1.msra.mxu0 %v193
    %223 = vmatprep.subr.mxu0 0.0
    %224 = vmatpush1.msra.mxu0 %v194
    %225 = vmatprep.subr.mxu0 0.0
    %226 = vmatpush1.msra.mxu0 %v195
    %227 = vmatprep.subr.mxu0 0.0
    %228 = vmatpush1.msra.mxu0 %v196
    %229 = vmatprep.subr.mxu0 0.0
    %230 = vmatpush1.msra.mxu0 %v197
    %231 = vmatprep.subr.mxu0 0.0
    %232 = vmatpush1.msra.mxu0 %v198
    %233 = vmatprep.subr.mxu0 0.0
    %234 = vmatpush1.msra.mxu0 %v199
    %235 = vmatprep.subr.mxu0 0.0
    %236 = vmatpush1.msra.mxu0 %v200
    %237 = vmatprep.subr.mxu0 0.0
    %238 = vmatpush1.msra.mxu0 %v201
    %239 = vmatprep.subr.mxu0 0.0
    %240 = vmatpush1.msra.mxu0 %v202
    %241 = vmatprep.subr.mxu0 0.0
    %242 = vmatpush1.msra.mxu0 %v203
    %243 = vmatprep.subr.mxu0 0.0
    %244 = vmatpush1.msra.mxu0 0.0
    %245 = vmatprep.subr.mxu0 0.0
    %246 = vmatpush1.msra.mxu0 0.0
    %247 = vmatprep.subr.mxu0 0.0
    %248 = vmatpush1.msra.mxu0 0.0
    %249 = vmatprep.subr.mxu0 0.0
    %250 = vmatpush1.msra.mxu0 0.0
    %251 = vmatprep.subr.mxu0 0.0
    %252 = vmatpush1.msra.mxu0 0.0
    %253 = vmatprep.subr.mxu0 0.0
    %254 = vmatpush1.msra.mxu0 0.0
    %255 = vmatprep.subr.mxu0 0.0
    %256 = vmatpush1.msra.mxu0 0.0
    %257 = vmatprep.subr.mxu0 0.0
    %258 = vmatpush1.msra.mxu0 0.0
    %259 = vmatprep.subr.mxu0 0.0
    %260 = vmatpush1.msra.mxu0 0.0
    %261 = vmatprep.subr.mxu0 0.0
    %262 = vmatpush1.msra.mxu0 0.0
    %263 = vmatprep.subr.mxu0 0.0
    %264 = vmatpush1.msra.mxu0 0.0
    %265 = vmatprep.subr.mxu0 0.0
    %266 = vmatpush1.msra.mxu0 0.0
    %267 = vmatprep.subr.mxu0 0.0
    %268 = vmatpush1.msra.mxu0 0.0
    %269 = vmatprep.subr.mxu0 0.0
    %270 = vmatpush1.msra.mxu0 0.0
    %271 = vmatprep.subr.mxu0 0.0
    %272 = vmatpush1.msra.mxu0 0.0
    %273 = vmatprep.subr.mxu0 0.0
    %274 = vmatpush1.msra.mxu0 0.0
    %275 = vmatprep.mubr.f32.mxu0 0.0
    %276 = vmatmul.mubr.f32.gmra.mrb[0].mxu0 %v186
    %v277 = vpop.f32.mrb[0].mxu0
    %v278 = vadd.f32 %v209, %v277
    %v279 = vpop.f32.mrb[0].mxu0
    %280 = vmatprep.mubr.f32.mxu0 0.0
    %281 = vmatmul.mubr.f32.gmra.mrb[0].mxu0 %v187
    %v282 = vpop.f32.mrb[0].mxu0
    %v283 = vadd.f32 %v209, %v282
    %v284 = vpop.f32.mrb[0].mxu0
    %285 = vdwg.mxu0
    %v286 = vmax.f32 %v278, 0.0
    %v287 = vmax.f32 %v283, 0.0
    %288 = vst [vmem:[#allocation2] sm:$0xff] %v286
    %289 = vst [vmem:[#allocation2 + $0x8] sm:$0xff] %v287
    %v290 = vld [vmem:[#allocation2] sm:$0xff]
    %v291 = vld [vmem:[#allocation2 + $0x8] sm:$0xff]
    %s292 = scalar_lea.vmem [#allocation8], 128
    %v293 = vld [vmem:[%s292] sm:$0xff]
    %v294 = vld [vmem:[%s292 + $0x8] sm:$0xff]
    %v295 = vld [vmem:[%s292 + $0x10] sm:$0xff]
    %v296 = vld [vmem:[%s292 + $0x18] sm:$0xff]
    %v297 = vld [vmem:[%s292 + $0x20] sm:$0xff]
    %v298 = vld [vmem:[%s292 + $0x28] sm:$0xff]
    %v299 = vld [vmem:[%s292 + $0x30] sm:$0xff]
    %v300 = vld [vmem:[%s292 + $0x38] sm:$0xff]
    %v301 = vld [vmem:[%s292 + $0x40] sm:$0xff]
    %v302 = vld [vmem:[%s292 + $0x48] sm:$0xff]
    %v303 = vld [vmem:[%s292 + $0x50] sm:$0xff]
    %v304 = vld [vmem:[%s292 + $0x58] sm:$0xff]
    %v305 = vld [vmem:[%s292 + $0x60] sm:$0xff]
    %v306 = vld [vmem:[%s292 + $0x68] sm:$0xff]
    %v307 = vld [vmem:[%s292 + $0x70] sm:$0xff]
    %v308 = vld [vmem:[%s292 + $0x78] sm:$0xff]
    %s309 = scalar_lea.vmem %s4, 1
    %v310 = vld [vmem:[%s309] sm:$0x1]
    %v312 = vlaneseq
    %v313 = vshrl.u32 %v312, 7
    %v314 = vsub.s32 0, %v313
    %v315 = vrot.slane %v310, %v314
    %317 = vmatprep.subr.mxu0 0.0
    %318 = vmatpush1.msra.mxu0 %v293
    %319 = vmatprep.subr.mxu0 0.0
    %320 = vmatpush1.msra.mxu0 %v294
    %321 = vmatprep.subr.mxu0 0.0
    %322 = vmatpush1.msra.mxu0 %v295
    %323 = vmatprep.subr.mxu0 0.0
    %324 = vmatpush1.msra.mxu0 %v296
    %325 = vmatprep.subr.mxu0 0.0
    %326 = vmatpush1.msra.mxu0 %v297
    %327 = vmatprep.subr.mxu0 0.0
    %328 = vmatpush1.msra.mxu0 %v298
    %329 = vmatprep.subr.mxu0 0.0
    %330 = vmatpush1.msra.mxu0 %v299
    %331 = vmatprep.subr.mxu0 0.0
    %332 = vmatpush1.msra.mxu0 %v300
    %333 = vmatprep.subr.mxu0 0.0
    %334 = vmatpush1.msra.mxu0 %v301
    %335 = vmatprep.subr.mxu0 0.0
    %336 = vmatpush1.msra.mxu0 %v302
    %337 = vmatprep.subr.mxu0 0.0
    %338 = vmatpush1.msra.mxu0 %v303
    %339 = vmatprep.subr.mxu0 0.0
    %340 = vmatpush1.msra.mxu0 %v304
    %341 = vmatprep.subr.mxu0 0.0
    %342 = vmatpush1.msra.mxu0 %v305
    %343 = vmatprep.subr.mxu0 0.0
    %344 = vmatpush1.msra.mxu0 %v306
    %345 = vmatprep.subr.mxu0 0.0
    %346 = vmatpush1.msra.mxu0 %v307
    %347 = vmatprep.subr.mxu0 0.0
    %348 = vmatpush1.msra.mxu0 %v308
    %349 = vmatprep.subr.mxu0 0.0
    %350 = vmatpush1.msra.mxu0 0.0
    %351 = vmatprep.subr.mxu0 0.0
    %352 = vmatpush1.msra.mxu0 0.0
    %353 = vmatprep.subr.mxu0 0.0
    %354 = vmatpush1.msra.mxu0 0.0
    %355 = vmatprep.subr.mxu0 0.0
    %356 = vmatpush1.msra.mxu0 0.0
    %357 = vmatprep.subr.mxu0 0.0
    %358 = vmatpush1.msra.mxu0 0.0
    %359 = vmatprep.subr.mxu0 0.0
    %360 = vmatpush1.msra.mxu0 0.0
    %361 = vmatprep.subr.mxu0 0.0
    %362 = vmatpush1.msra.mxu0 0.0
    %363 = vmatprep.subr.mxu0 0.0
    %364 = vmatpush1.msra.mxu0 0.0
    %365 = vmatprep.subr.mxu0 0.0
    %366 = vmatpush1.msra.mxu0 0.0
    %367 = vmatprep.subr.mxu0 0.0
    %368 = vmatpush1.msra.mxu0 0.0
    %369 = vmatprep.subr.mxu0 0.0
    %370 = vmatpush1.msra.mxu0 0.0
    %371 = vmatprep.subr.mxu0 0.0
    %372 = vmatpush1.msra.mxu0 0.0
    %373 = vmatprep.subr.mxu0 0.0
    %374 = vmatpush1.msra.mxu0 0.0
    %375 = vmatprep.subr.mxu0 0.0
    %376 = vmatpush1.msra.mxu0 0.0
    %377 = vmatprep.subr.mxu0 0.0
    %378 = vmatpush1.msra.mxu0 0.0
    %379 = vmatprep.subr.mxu0 0.0
    %380 = vmatpush1.msra.mxu0 0.0
    %381 = vmatprep.mubr.f32.mxu0 0.0
    %382 = vmatmul.mubr.f32.gmra.mrb[0].mxu0 %v290
    %v383 = vpop.f32.mrb[0].mxu0
    %v384 = vadd.f32 %v315, %v383
    %v385 = vpop.f32.mrb[0].mxu0
    %386 = vmatprep.mubr.f32.mxu0 0.0
    %387 = vmatmul.mubr.f32.gmra.mrb[0].mxu0 %v291
    %v388 = vpop.f32.mrb[0].mxu0
    %v389 = vadd.f32 %v315, %v388
    %v390 = vpop.f32.mrb[0].mxu0
    %391 = vdwg.mxu0
    %v392 = vmax.f32 %v384, 0.0
    %v393 = vmax.f32 %v389, 0.0
    %394 = vst [vmem:[#allocation2] sm:$0xff] %v392
    %395 = vst [vmem:[#allocation2 + $0x8] sm:$0xff] %v393
    %v396 = vld [vmem:[#allocation2] sm:$0xff]
    %v397 = vld [vmem:[#allocation2 + $0x8] sm:$0xff]
    %v398 = vld [vmem:[#allocation9] sm:$0xff]
    %v399 = vld [vmem:[#allocation9 + $0x8] sm:$0xff]
    %v400 = vld [vmem:[#allocation9 + $0x10] sm:$0xff]
    %v401 = vld [vmem:[#allocation9 + $0x18] sm:$0xff]
    %v402 = vld [vmem:[#allocation9 + $0x20] sm:$0xff]
    %v403 = vld [vmem:[#allocation9 + $0x28] sm:$0xff]
    %v404 = vld [vmem:[#allocation9 + $0x30] sm:$0xff]
    %v405 = vld [vmem:[#allocation9 + $0x38] sm:$0xff]
    %v406 = vld [vmem:[#allocation9 + $0x40] sm:$0xff]
    %v407 = vld [vmem:[#allocation9 + $0x48] sm:$0xff]
    %v408 = vld [vmem:[#allocation9 + $0x50] sm:$0xff]
    %v409 = vld [vmem:[#allocation9 + $0x58] sm:$0xff]
    %v410 = vld [vmem:[#allocation9 + $0x60] sm:$0xff]
    %v411 = vld [vmem:[#allocation9 + $0x68] sm:$0xff]
    %v412 = vld [vmem:[#allocation9 + $0x70] sm:$0xff]
    %v413 = vld [vmem:[#allocation9 + $0x78] sm:$0xff]
    %v414 = vld [vmem:[%s6] sm:$0x1]
    %v416 = vlaneseq
    %v417 = vshrl.u32 %v416, 7
    %v418 = vsub.s32 0, %v417
    %v419 = vrot.slane %v414, %v418
    %421 = vmatprep.subr.mxu0 0.0
    %422 = vmatpush1.msra.mxu0 %v398
    %423 = vmatprep.subr.mxu0 0.0
    %424 = vmatpush1.msra.mxu0 %v399
    %425 = vmatprep.subr.mxu0 0.0
    %426 = vmatpush1.msra.mxu0 %v400
    %427 = vmatprep.subr.mxu0 0.0
    %428 = vmatpush1.msra.mxu0 %v401
    %429 = vmatprep.subr.mxu0 0.0
    %430 = vmatpush1.msra.mxu0 %v402
    %431 = vmatprep.subr.mxu0 0.0
    %432 = vmatpush1.msra.mxu0 %v403
    %433 = vmatprep.subr.mxu0 0.0
    %434 = vmatpush1.msra.mxu0 %v404
    %435 = vmatprep.subr.mxu0 0.0
    %436 = vmatpush1.msra.mxu0 %v405
    %437 = vmatprep.subr.mxu0 0.0
    %438 = vmatpush1.msra.mxu0 %v406
    %439 = vmatprep.subr.mxu0 0.0
    %440 = vmatpush1.msra.mxu0 %v407
    %441 = vmatprep.subr.mxu0 0.0
    %442 = vmatpush1.msra.mxu0 %v408
    %443 = vmatprep.subr.mxu0 0.0
    %444 = vmatpush1.msra.mxu0 %v409
    %445 = vmatprep.subr.mxu0 0.0
    %446 = vmatpush1.msra.mxu0 %v410
    %447 = vmatprep.subr.mxu0 0.0
    %448 = vmatpush1.msra.mxu0 %v411
    %449 = vmatprep.subr.mxu0 0.0
    %450 = vmatpush1.msra.mxu0 %v412
    %451 = vmatprep.subr.mxu0 0.0
    %452 = vmatpush1.msra.mxu0 %v413
    %453 = vmatprep.subr.mxu0 0.0
    %454 = vmatpush1.msra.mxu0 0.0
    %455 = vmatprep.subr.mxu0 0.0
    %456 = vmatpush1.msra.mxu0 0.0
    %457 = vmatprep.subr.mxu0 0.0
    %458 = vmatpush1.msra.mxu0 0.0
    %459 = vmatprep.subr.mxu0 0.0
    %460 = vmatpush1.msra.mxu0 0.0
    %461 = vmatprep.subr.mxu0 0.0
    %462 = vmatpush1.msra.mxu0 0.0
    %463 = vmatprep.subr.mxu0 0.0
    %464 = vmatpush1.msra.mxu0 0.0
    %465 = vmatprep.subr.mxu0 0.0
    %466 = vmatpush1.msra.mxu0 0.0
    %467 = vmatprep.subr.mxu0 0.0
    %468 = vmatpush1.msra.mxu0 0.0
    %469 = vmatprep.subr.mxu0 0.0
    %470 = vmatpush1.msra.mxu0 0.0
    %471 = vmatprep.subr.mxu0 0.0
    %472 = vmatpush1.msra.mxu0 0.0
    %473 = vmatprep.subr.mxu0 0.0
    %474 = vmatpush1.msra.mxu0 0.0
    %475 = vmatprep.subr.mxu0 0.0
    %476 = vmatpush1.msra.mxu0 0.0
    %477 = vmatprep.subr.mxu0 0.0
    %478 = vmatpush1.msra.mxu0 0.0
    %479 = vmatprep.subr.mxu0 0.0
    %480 = vmatpush1.msra.mxu0 0.0
    %481 = vmatprep.subr.mxu0 0.0
    %482 = vmatpush1.msra.mxu0 0.0
    %483 = vmatprep.subr.mxu0 0.0
    %484 = vmatpush1.msra.mxu0 0.0
    %485 = vmatprep.mubr.f32.mxu0 0.0
    %486 = vmatmul.mubr.f32.gmra.mrb[0].mxu0 %v396
    %v487 = vpop.f32.mrb[0].mxu0
    %v488 = vadd.f32 %v419, %v487
    %v489 = vpop.f32.mrb[0].mxu0
    %490 = vmatprep.mubr.f32.mxu0 0.0
    %491 = vmatmul.mubr.f32.gmra.mrb[0].mxu0 %v397
    %v492 = vpop.f32.mrb[0].mxu0
    %v493 = vadd.f32 %v419, %v492
    %v494 = vpop.f32.mrb[0].mxu0
    %495 = vdwg.mxu0
    %496 = vst [vmem:[#allocation11] sm:$0xff] %v488
    %497 = vst [vmem:[#allocation11 + $0x8] sm:$0xff] %v493
    // Predicated region
    $region46: #{tpu_custom_call.1} parent=1 // pred_check
      _
    $region47: #{tpu_custom_call.1} parent=1 // pred_check_branch
      %499 = sbr.rel (0) target = $region49
    $region48: #{tpu_custom_call.1} parent=1 // pred_region
      %s501 = ssub.s32 256, 256
      %502 = vsyncadd [#allocation5], %s501
      %s503 = sshll.u32 [#allocation11], 4
      %s504 = int_to_ptr.vmem [resolvable:$true] %s503
      %509 = dma.vmem_to_hbm [thread:$0]  %s504, 256, %s7, [#allocation5], 128, 128, 8
    $region49: #{tpu_custom_call.1} parent=1 // pred_fallthru
      _
    // Predicated region
    $region50: #{tpu_custom_call.1} parent=1 // pred_check
      _
    $region51: #{tpu_custom_call.1} parent=1 // pred_check_branch
      %511 = sbr.rel (0) target = $region53
    $region52: #{tpu_custom_call.1} parent=1 // pred_region
      %512 = dma.done [#allocation5], 256
    $region53: #{tpu_custom_call.1} parent=1 // pred_fallthru
      _
    %513 = vsyncpa [#allocation4], 1
    %514 = vsyncpa [#allocation7], 1
    %515 = vsyncpa [#allocation10], 1
    %516 = vsyncpa [#allocation5], 1

</llo_original>
